<compile_context>
chip_gen: v5e
topology: v5e:2x2
jax: 0.10.0
libtpu: 0.0.40
codegen_flags: <defaults>
</compile_context>

<pallas_src>
import functools

import jax
import jax.numpy as jnp
from jax.experimental import pallas as pl
from jax.experimental.pallas import tpu as pltpu

# ---------------- model hyper-parameters (consistent with the module) -------
HID_CHANNELS = 32            # hid_channels
HEADS = 8                    # heads
HEAD_CHANNELS = 64           # head_channels
INNER = HEADS * HEAD_CHANNELS            # 512
SCALE = HEAD_CHANNELS ** (-0.5)
# dropout = 0.0 -> identity, nothing to do in the kernel.


def _cdiv(a, b):
    return -(-a // b)


def _tpu_config():
    """Best-effort TPU generation detection -> (name, num_tensorcores, vmem_limit_bytes)."""
    kind = ""
    try:
        kind = jax.devices()[0].device_kind.lower()
    except Exception:  # pragma: no cover - defensive
        pass
    if "v5 lite" in kind or "v5lite" in kind or "v5e" in kind:
        # 1 TC, 128 MiB physical VMEM (16 MiB scoped default -> raise).
        return "v5e", 1, 64 * 1024 * 1024
    if "7" in kind:
        # 2 TCs/chip, only 64 MiB physical VMEM per TC -> conservative limit.
        return "v7x", 2, 48 * 1024 * 1024
    # v6e-like default: 1 TC, 128 MiB physical VMEM (32 MiB scoped default -> raise).
    return "v6e", 1, 64 * 1024 * 1024


def _attention_kernel(x_ref, wqkv_ref, wout_ref, bout_ref, o_ref, heads_ref,
                      *, compute_dtype, slab_dtype):
    # x_ref:     (Bt, N, C)     block of batch elements
    # wqkv_ref:  (C, 3*INNER)   to_qkv weight, transposed; SCALE folded into q cols
    # wout_ref:  (INNER, C)     to_out[0] weight, transposed
    # bout_ref:  (1, C)         to_out[0] bias (f32)
    # o_ref:     (Bt, N, C)
    # heads_ref: (Bt*N, INNER)  VMEM scratch for the fused head-concat
    bt, n, c = x_ref.shape
    rows = bt * n

    # ---- QKV projection: one big MXU matmul over the whole (Bt*N, C) slab ----
    x2d = x_ref[...].reshape(rows, c).astype(compute_dtype)
    qkv = jnp.dot(x2d, wqkv_ref[...],
                  preferred_element_type=jnp.float32)            # (Bt*N, 3*INNER)
    # SCALE is already folded into the q columns of wqkv (wrapper).
    qkv = qkv.astype(slab_dtype).reshape(bt, n, 3 * INNER)

    # ---- per-head attention (static loop; batched over Bt inside each head) ----
    for h in range(HEADS):
        lo = h * HEAD_CHANNELS
        q = qkv[:, :, lo:lo + HEAD_CHANNELS].astype(compute_dtype)                       # (Bt, N, D)
        k = qkv[:, :, INNER + lo:INNER + lo + HEAD_CHANNELS].astype(compute_dtype)       # (Bt, N, D)
        v = qkv[:, :, 2 * INNER + lo:2 * INNER + lo + HEAD_CHANNELS].astype(compute_dtype)

        dots = jnp.einsum('bqd,bkd->bqk', q, k,
                          preferred_element_type=jnp.float32)    # (Bt, N, N), pre-scaled
        m = jnp.max(dots, axis=-1, keepdims=True)
        e = jnp.exp(dots - m)                                    # unnormalized softmax (f32)
        s = jnp.sum(e, axis=-1, keepdims=True)                   # (Bt, N, 1)

        oh = jnp.einsum('bqk,bkd->bqd', e.astype(compute_dtype), v,
                        preferred_element_type=jnp.float32)      # (Bt, N, D)
        # Post-normalize: cheap (N, D) multiply with the exact EUP reciprocal
        # instead of dividing the (N, N) attention matrix.  dropout(0.0) = identity.
        oh = oh * pl.reciprocal(s, approx=False)

        # Fused head-concat: write this head's slab into its INNER-column slot.
        heads_ref[:, lo:lo + HEAD_CHANNELS] = (
            oh.reshape(rows, HEAD_CHANNELS).astype(heads_ref.dtype))

    # ---- single K=512 output projection (full MXU contraction depth) ----
    y = jnp.dot(heads_ref[...], wout_ref[...],
                preferred_element_type=jnp.float32)              # (Bt*N, C)
    y = y + bout_ref[...]                                        # bias once per block
    o_ref[...] = y.reshape(bt, n, c).astype(o_ref.dtype)         # single slab store


def _default_block_b(B, N, x_itemsize, compute_itemsize, slab_itemsize,
                     num_tc, vmem_limit_bytes):
    """VMEM-budgeted batch block size (rows = batch elements * N)."""
    # Conservative per-(sequence-row) footprint inside one grid step:
    per_row = (4 * 128 * x_itemsize            # x in + y out, double-buffered, lanes C->128
               + 3 * INNER * slab_itemsize     # qkv activation slab
               + INNER * compute_itemsize      # fused head-concat scratch
               + 3 * N * 4                     # one head's f32 dots + exp temporaries
               + 4 * HEAD_CHANNELS * 4)        # per-head q/k/v/oh temporaries
    weight_bytes = (2 * HID_CHANNELS * 3 * INNER * compute_itemsize   # wqkv (double-buffered)
                    + 2 * INNER * 128 * compute_itemsize              # wout, lane-padded
                    + 2 * 8 * 128 * 4)                                # bias, padded
    budget = int(0.75 * vmem_limit_bytes) - weight_bytes
    max_rows = max(N, budget // per_row)
    bt_cap = max(1, max_rows // N)

    if num_tc <= 1:
        # v5e / v6e: single TensorCore -> fewest, largest steps.
        return min(B, bt_cap)

    # v7x: keep >= num_tc (ideally a few) balanced "parallel" steps.
    steps = max(min(B, 2 * num_tc), _cdiv(B, bt_cap))
    if steps % num_tc and steps < B:
        steps = min(B, _cdiv(steps, num_tc) * num_tc)
    return max(1, min(bt_cap, _cdiv(B, steps)))


def attention_forward(x, wqkv_t, wout_t, bout, *, block_b=None, compute_dtype="auto"):
    """ViT multi-head attention forward.

    x:       (B, N, C)
    wqkv_t:  (C, 3*INNER)  to_qkv.weight transposed (x @ W layout)
    wout_t:  (INNER, C)    to_out[0].weight transposed
    bout:    (C,)          to_out[0].bias
    compute_dtype: dtype of the MXU matmul operands ("auto" -> bfloat16);
                   accumulation and the softmax always stay in float32.
    """
    B, N, C = x.shape
    assert C == HID_CHANNELS
    assert wqkv_t.shape == (C, 3 * INNER)
    assert wout_t.shape == (INNER, C)
    assert bout.shape == (C,)

    gen, num_tc, vmem_limit = _tpu_config()

    if compute_dtype == "auto":
        compute_dtype = jnp.bfloat16          # bf16 MXU on v5e/v6e/v7x; f32 acc inside
    compute_dtype = jnp.dtype(compute_dtype)
    # v5e has no bf16 VPU/EUP: keep the qkv slab / softmax source in f32 and cast
    # operands only at the matmuls.  On v6e/v7x a bf16 slab halves vreg/VMEM traffic.
    if compute_dtype == jnp.dtype(jnp.float32) or gen == "v5e":
        slab_dtype = jnp.dtype(jnp.float32)
    else:
        slab_dtype = compute_dtype

    # One-time weight transforms: fold SCALE into the q columns of the qkv weight.
    col_scale = jnp.concatenate([
        jnp.full((INNER,), SCALE, dtype=wqkv_t.dtype),
        jnp.ones((2 * INNER,), dtype=wqkv_t.dtype),
    ])
    wqkv_s = (wqkv_t * col_scale[None, :]).astype(compute_dtype)
    wout_c = wout_t.astype(compute_dtype)
    bout2d = bout.reshape(1, C).astype(jnp.float32)

    if block_b is None:
        block_b = _default_block_b(
            B, N, x.dtype.itemsize, compute_dtype.itemsize, slab_dtype.itemsize,
            num_tc, vmem_limit)
    block_b = max(1, min(int(block_b), B))
    grid = (_cdiv(B, block_b),)

    itemsize = x.dtype.itemsize
    flops = int(2 * B * N * C * 3 * INNER                   # qkv projection
                + 2 * B * HEADS * N * N * HEAD_CHANNELS * 2  # dots + attn @ v
                + 2 * B * N * INNER * C)                     # output projection
    bytes_accessed = int((B * N * C) * itemsize * 2          # x in, y out
                         + wqkv_s.size * compute_dtype.itemsize
                         + wout_c.size * compute_dtype.itemsize
                         + bout2d.size * 4)

    kernel = functools.partial(_attention_kernel,
                               compute_dtype=compute_dtype,
                               slab_dtype=slab_dtype)

    return pl.pallas_call(
        kernel,
        out_shape=jax.ShapeDtypeStruct((B, N, C), x.dtype),
        grid_spec=pltpu.PrefetchScalarGridSpec(
            num_scalar_prefetch=0,
            grid=grid,
            in_specs=[
                pl.BlockSpec((block_b, N, C), lambda b: (b, 0, 0)),
                pl.BlockSpec((C, 3 * INNER), lambda b: (0, 0)),
                pl.BlockSpec((INNER, C), lambda b: (0, 0)),
                pl.BlockSpec((1, C), lambda b: (0, 0)),
            ],
            out_specs=pl.BlockSpec((block_b, N, C), lambda b: (b, 0, 0)),
            scratch_shapes=[pltpu.VMEM((block_b * N, INNER), compute_dtype)],
        ),
        compiler_params=pltpu.CompilerParams(
            dimension_semantics=("parallel",),
            vmem_limit_bytes=vmem_limit),
        cost_estimate=pl.CostEstimate(
            flops=flops,
            transcendentals=int(B * HEADS * N * N),
            bytes_accessed=bytes_accessed),
    )(x, wqkv_s, wout_c, bout2d)


def _reference(x, wqkv_t, wout_t, bout):
    """Pure-JAX reference mirroring the PyTorch forward."""
    B, N, C = x.shape
    qkv = x @ wqkv_t                                         # (B, N, 3*INNER)
    q, k, v = jnp.split(qkv, 3, axis=-1)

    def to_heads(t):  # 'b n (h d) -> b h n d'
        return t.reshape(B, N, HEADS, HEAD_CHANNELS).transpose(0, 2, 1, 3)

    q, k, v = map(to_heads, (q, k, v))
    dots = jnp.einsum("bhnd,bhmd->bhnm", q, k) * SCALE
    attn = jax.nn.softmax(dots, axis=-1)
    out = jnp.einsum("bhnm,bhmd->bhnd", attn, v)
    out = out.transpose(0, 2, 1, 3).reshape(B, N, INNER)     # 'b h n d -> b n (h d)'
    return out @ wout_t + bout


if __name__ == "__main__":
    key = jax.random.PRNGKey(0)
    k_x, k_wqkv, k_wout, k_bout = jax.random.split(key, 4)

    B, N, C = 2, 8, HID_CHANNELS
    x = jax.random.normal(k_x, (B, N, C), dtype=jnp.float32)

    # PyTorch Linear stores weight as (out, in); we keep the transposed (in, out) form.
    wqkv_t = jax.random.normal(k_wqkv, (C, 3 * INNER), dtype=jnp.float32) * (C ** -0.5)
    wout_t = jax.random.normal(k_wout, (INNER, C), dtype=jnp.float32) * (INNER ** -0.5)
    bout = jax.random.normal(k_bout, (C,), dtype=jnp.float32) * 0.01

    ref = _reference(x, wqkv_t, wout_t, bout)

    # Full-f32 matmul-operand path: tight check vs. reference.
    out_f32 = jax.block_until_ready(
        attention_forward(x, wqkv_t, wout_t, bout, compute_dtype=jnp.float32))
    assert out_f32.shape == (B, N, C)
    assert jnp.allclose(out_f32, ref, atol=1e-2, rtol=1e-2), (
        f"f32 mismatch vs reference, max abs err {jnp.max(jnp.abs(out_f32 - ref))}")

    # Default path (bf16 matmul operands, f32 accumulation + f32 softmax).
    out_bf16 = jax.block_until_ready(attention_forward(x, wqkv_t, wout_t, bout))
    assert out_bf16.shape == (B, N, C)
    assert jnp.allclose(out_bf16.astype(jnp.float32), ref, atol=1e-1, rtol=1e-1), (
        f"bf16 mismatch vs reference, max abs err "
        f"{jnp.max(jnp.abs(out_bf16.astype(jnp.float32) - ref))}")

    # Multi-step grid path (block_b=1 -> 2 grid steps) to exercise the batch tiling.
    out_tiled = jax.block_until_ready(
        attention_forward(x, wqkv_t, wout_t, bout, block_b=1, compute_dtype=jnp.float32))
    assert jnp.allclose(out_tiled, ref, atol=1e-2, rtol=1e-2), (
        f"tiled mismatch vs reference, max abs err {jnp.max(jnp.abs(out_tiled - ref))}")

    print("KERNEL_OK")
</pallas_src>

<mosaic_0001>
module attributes {stable_mosaic.version = 11 : i64} {
  func.func @_attention_kernel(%arg0: i32, %arg1: memref<2x8x32xf32, #tpu.memory_space<vmem>>, %arg2: memref<32x1536xf32, #tpu.memory_space<vmem>>, %arg3: memref<512x32xf32, #tpu.memory_space<vmem>>, %arg4: memref<1x32xf32, #tpu.memory_space<vmem>>, %arg5: memref<2x8x32xf32, #tpu.memory_space<vmem>>, %arg6: memref<16x512xf32, #tpu.memory_space<vmem>>) attributes {dimension_semantics = [#tpu.dimension_semantics<parallel>], iteration_bounds = array<i64: 1>, scalar_prefetch = 0 : i64, scratch_operands = 1 : i64, tpu.core_type = #tpu.core_type<tc>, window_params = [{transform_indices = @transform_0, window_bounds = array<i64: 2, 8, 32>}, {pipeline_mode = #tpu.pipeline_mode<synchronous>, transform_indices = @transform_1, window_bounds = array<i64: 32, 1536>}, {pipeline_mode = #tpu.pipeline_mode<synchronous>, transform_indices = @transform_2, window_bounds = array<i64: 512, 32>}, {pipeline_mode = #tpu.pipeline_mode<synchronous>, transform_indices = @transform_3, window_bounds = array<i64: 1, 32>}, {transform_indices = @transform_4, window_bounds = array<i64: 2, 8, 32>}]} {
    %c0 = arith.constant 0 : index
    %c0_0 = arith.constant 0 : index
    %c0_1 = arith.constant 0 : index
    %0 = vector.load %arg1[%c0, %c0_0, %c0_1] : memref<2x8x32xf32, #tpu.memory_space<vmem>>, vector<2x8x32xf32>
    %1 = vector.shape_cast %0 : vector<2x8x32xf32> to vector<16x32xf32>
    %c0_2 = arith.constant 0 : index
    %c0_3 = arith.constant 0 : index
    %2 = vector.load %arg2[%c0_2, %c0_3] : memref<32x1536xf32, #tpu.memory_space<vmem>>, vector<32x1536xf32>
    %cst = arith.constant dense<0.000000e+00> : vector<16x1536xf32>
    %3 = tpu.matmul %1, %2, %cst {dimension_numbers = #tpu.dot_dimension_numbers<[1], [0], [0], [1], [0, 0, 1, 1], [], []>} : vector<16x32xf32>, vector<32x1536xf32>, vector<16x1536xf32> -> vector<16x1536xf32>
    %4 = vector.shape_cast %3 : vector<16x1536xf32> to vector<2x8x1536xf32>
    %5 = vector.extract_strided_slice %4 {offsets = [0, 0, 0], sizes = [2, 8, 64], strides = [1, 1, 1]} : vector<2x8x1536xf32> to vector<2x8x64xf32>
    %6 = vector.extract_strided_slice %4 {offsets = [0, 0, 512], sizes = [2, 8, 64], strides = [1, 1, 1]} : vector<2x8x1536xf32> to vector<2x8x64xf32>
    %7 = vector.extract_strided_slice %4 {offsets = [0, 0, 1024], sizes = [2, 8, 64], strides = [1, 1, 1]} : vector<2x8x1536xf32> to vector<2x8x64xf32>
    "tpu.trace_start"() <{level = 10 : i32, message = "bqd,bkd->bqk"}> : () -> ()
    %cst_4 = arith.constant dense<0.000000e+00> : vector<2x8x8xf32>
    %8 = tpu.matmul %5, %6, %cst_4 {dimension_numbers = #tpu.dot_dimension_numbers<[2], [2], [1], [1], [0, 0, 0, 1, 1, 1], [0], [0]>} : vector<2x8x64xf32>, vector<2x8x64xf32>, vector<2x8x8xf32> -> vector<2x8x8xf32>
    "tpu.trace_stop"() : () -> ()
    %cst_5 = arith.constant dense<0xFF800000> : vector<2x8xf32>
    %9 = vector.multi_reduction <maximumf>, %8, %cst_5 [2] : vector<2x8x8xf32> to vector<2x8xf32>
    %10 = vector.shape_cast %9 : vector<2x8xf32> to vector<2x8x1xf32>
    %11 = vector.broadcast %10 : vector<2x8x1xf32> to vector<2x8x8xf32>
    %12 = arith.subf %8, %11 : vector<2x8x8xf32>
    %13 = math.exp %12 : vector<2x8x8xf32>
    %cst_6 = arith.constant dense<0.000000e+00> : vector<2x8xf32>
    %14 = vector.multi_reduction <add>, %13, %cst_6 [2] : vector<2x8x8xf32> to vector<2x8xf32>
    %15 = vector.shape_cast %14 : vector<2x8xf32> to vector<2x8x1xf32>
    "tpu.trace_start"() <{level = 10 : i32, message = "bqk,bkd->bqd"}> : () -> ()
    %cst_7 = arith.constant dense<0.000000e+00> : vector<2x8x64xf32>
    %16 = tpu.matmul %13, %7, %cst_7 {dimension_numbers = #tpu.dot_dimension_numbers<[2], [1], [1], [2], [0, 0, 0, 1, 1, 2], [0], [0]>} : vector<2x8x8xf32>, vector<2x8x64xf32>, vector<2x8x64xf32> -> vector<2x8x64xf32>
    "tpu.trace_stop"() : () -> ()
    %17 = tpu.reciprocal %15 : vector<2x8x1xf32> -> vector<2x8x1xf32>
    %18 = vector.broadcast %17 : vector<2x8x1xf32> to vector<2x8x64xf32>
    %19 = arith.mulf %16, %18 : vector<2x8x64xf32>
    %20 = vector.shape_cast %19 : vector<2x8x64xf32> to vector<16x64xf32>
    %c0_8 = arith.constant 0 : index
    %c0_9 = arith.constant 0 : index
    %21 = vector.load %arg6[%c0_8, %c0_9] : memref<16x512xf32, #tpu.memory_space<vmem>>, vector<16x64xf32>
    tpu.vector_store %arg6[%c0_8, %c0_9], %20 {strides = array<i32>} : memref<16x512xf32, #tpu.memory_space<vmem>>, vector<16x64xf32>,
    %22 = vector.extract_strided_slice %4 {offsets = [0, 0, 64], sizes = [2, 8, 64], strides = [1, 1, 1]} : vector<2x8x1536xf32> to vector<2x8x64xf32>
    %23 = vector.extract_strided_slice %4 {offsets = [0, 0, 576], sizes = [2, 8, 64], strides = [1, 1, 1]} : vector<2x8x1536xf32> to vector<2x8x64xf32>
    %24 = vector.extract_strided_slice %4 {offsets = [0, 0, 1088], sizes = [2, 8, 64], strides = [1, 1, 1]} : vector<2x8x1536xf32> to vector<2x8x64xf32>
    "tpu.trace_start"() <{level = 10 : i32, message = "bqd,bkd->bqk"}> : () -> ()
    %cst_10 = arith.constant dense<0.000000e+00> : vector<2x8x8xf32>
    %25 = tpu.matmul %22, %23, %cst_10 {dimension_numbers = #tpu.dot_dimension_numbers<[2], [2], [1], [1], [0, 0, 0, 1, 1, 1], [0], [0]>} : vector<2x8x64xf32>, vector<2x8x64xf32>, vector<2x8x8xf32> -> vector<2x8x8xf32>
    "tpu.trace_stop"() : () -> ()
    %cst_11 = arith.constant dense<0xFF800000> : vector<2x8xf32>
    %26 = vector.multi_reduction <maximumf>, %25, %cst_11 [2] : vector<2x8x8xf32> to vector<2x8xf32>
    %27 = vector.shape_cast %26 : vector<2x8xf32> to vector<2x8x1xf32>
    %28 = vector.broadcast %27 : vector<2x8x1xf32> to vector<2x8x8xf32>
    %29 = arith.subf %25, %28 : vector<2x8x8xf32>
    %30 = math.exp %29 : vector<2x8x8xf32>
    %cst_12 = arith.constant dense<0.000000e+00> : vector<2x8xf32>
    %31 = vector.multi_reduction <add>, %30, %cst_12 [2] : vector<2x8x8xf32> to vector<2x8xf32>
    %32 = vector.shape_cast %31 : vector<2x8xf32> to vector<2x8x1xf32>
    "tpu.trace_start"() <{level = 10 : i32, message = "bqk,bkd->bqd"}> : () -> ()
    %cst_13 = arith.constant dense<0.000000e+00> : vector<2x8x64xf32>
    %33 = tpu.matmul %30, %24, %cst_13 {dimension_numbers = #tpu.dot_dimension_numbers<[2], [1], [1], [2], [0, 0, 0, 1, 1, 2], [0], [0]>} : vector<2x8x8xf32>, vector<2x8x64xf32>, vector<2x8x64xf32> -> vector<2x8x64xf32>
    "tpu.trace_stop"() : () -> ()
    %34 = tpu.reciprocal %32 : vector<2x8x1xf32> -> vector<2x8x1xf32>
    %35 = vector.broadcast %34 : vector<2x8x1xf32> to vector<2x8x64xf32>
    %36 = arith.mulf %33, %35 : vector<2x8x64xf32>
    %37 = vector.shape_cast %36 : vector<2x8x64xf32> to vector<16x64xf32>
    %c0_14 = arith.constant 0 : index
    %c64 = arith.constant 64 : index
    %38 = vector.load %arg6[%c0_14, %c64] : memref<16x512xf32, #tpu.memory_space<vmem>>, vector<16x64xf32>
    tpu.vector_store %arg6[%c0_14, %c64], %37 {strides = array<i32>} : memref<16x512xf32, #tpu.memory_space<vmem>>, vector<16x64xf32>,
    %39 = vector.extract_strided_slice %4 {offsets = [0, 0, 128], sizes = [2, 8, 64], strides = [1, 1, 1]} : vector<2x8x1536xf32> to vector<2x8x64xf32>
    %40 = vector.extract_strided_slice %4 {offsets = [0, 0, 640], sizes = [2, 8, 64], strides = [1, 1, 1]} : vector<2x8x1536xf32> to vector<2x8x64xf32>
    %41 = vector.extract_strided_slice %4 {offsets = [0, 0, 1152], sizes = [2, 8, 64], strides = [1, 1, 1]} : vector<2x8x1536xf32> to vector<2x8x64xf32>
    "tpu.trace_start"() <{level = 10 : i32, message = "bqd,bkd->bqk"}> : () -> ()
    %cst_15 = arith.constant dense<0.000000e+00> : vector<2x8x8xf32>
    %42 = tpu.matmul %39, %40, %cst_15 {dimension_numbers = #tpu.dot_dimension_numbers<[2], [2], [1], [1], [0, 0, 0, 1, 1, 1], [0], [0]>} : vector<2x8x64xf32>, vector<2x8x64xf32>, vector<2x8x8xf32> -> vector<2x8x8xf32>
    "tpu.trace_stop"() : () -> ()
    %cst_16 = arith.constant dense<0xFF800000> : vector<2x8xf32>
    %43 = vector.multi_reduction <maximumf>, %42, %cst_16 [2] : vector<2x8x8xf32> to vector<2x8xf32>
    %44 = vector.shape_cast %43 : vector<2x8xf32> to vector<2x8x1xf32>
    %45 = vector.broadcast %44 : vector<2x8x1xf32> to vector<2x8x8xf32>
    %46 = arith.subf %42, %45 : vector<2x8x8xf32>
    %47 = math.exp %46 : vector<2x8x8xf32>
    %cst_17 = arith.constant dense<0.000000e+00> : vector<2x8xf32>
    %48 = vector.multi_reduction <add>, %47, %cst_17 [2] : vector<2x8x8xf32> to vector<2x8xf32>
    %49 = vector.shape_cast %48 : vector<2x8xf32> to vector<2x8x1xf32>
    "tpu.trace_start"() <{level = 10 : i32, message = "bqk,bkd->bqd"}> : () -> ()
    %cst_18 = arith.constant dense<0.000000e+00> : vector<2x8x64xf32>
    %50 = tpu.matmul %47, %41, %cst_18 {dimension_numbers = #tpu.dot_dimension_numbers<[2], [1], [1], [2], [0, 0, 0, 1, 1, 2], [0], [0]>} : vector<2x8x8xf32>, vector<2x8x64xf32>, vector<2x8x64xf32> -> vector<2x8x64xf32>
    "tpu.trace_stop"() : () -> ()
    %51 = tpu.reciprocal %49 : vector<2x8x1xf32> -> vector<2x8x1xf32>
    %52 = vector.broadcast %51 : vector<2x8x1xf32> to vector<2x8x64xf32>
    %53 = arith.mulf %50, %52 : vector<2x8x64xf32>
    %54 = vector.shape_cast %53 : vector<2x8x64xf32> to vector<16x64xf32>
    %c0_19 = arith.constant 0 : index
    %c128 = arith.constant 128 : index
    %55 = vector.load %arg6[%c0_19, %c128] : memref<16x512xf32, #tpu.memory_space<vmem>>, vector<16x64xf32>
    tpu.vector_store %arg6[%c0_19, %c128], %54 {strides = array<i32>} : memref<16x512xf32, #tpu.memory_space<vmem>>, vector<16x64xf32>,
    %56 = vector.extract_strided_slice %4 {offsets = [0, 0, 192], sizes = [2, 8, 64], strides = [1, 1, 1]} : vector<2x8x1536xf32> to vector<2x8x64xf32>
    %57 = vector.extract_strided_slice %4 {offsets = [0, 0, 704], sizes = [2, 8, 64], strides = [1, 1, 1]} : vector<2x8x1536xf32> to vector<2x8x64xf32>
    %58 = vector.extract_strided_slice %4 {offsets = [0, 0, 1216], sizes = [2, 8, 64], strides = [1, 1, 1]} : vector<2x8x1536xf32> to vector<2x8x64xf32>
    "tpu.trace_start"() <{level = 10 : i32, message = "bqd,bkd->bqk"}> : () -> ()
    %cst_20 = arith.constant dense<0.000000e+00> : vector<2x8x8xf32>
    %59 = tpu.matmul %56, %57, %cst_20 {dimension_numbers = #tpu.dot_dimension_numbers<[2], [2], [1], [1], [0, 0, 0, 1, 1, 1], [0], [0]>} : vector<2x8x64xf32>, vector<2x8x64xf32>, vector<2x8x8xf32> -> vector<2x8x8xf32>
    "tpu.trace_stop"() : () -> ()
    %cst_21 = arith.constant dense<0xFF800000> : vector<2x8xf32>
    %60 = vector.multi_reduction <maximumf>, %59, %cst_21 [2] : vector<2x8x8xf32> to vector<2x8xf32>
    %61 = vector.shape_cast %60 : vector<2x8xf32> to vector<2x8x1xf32>
    %62 = vector.broadcast %61 : vector<2x8x1xf32> to vector<2x8x8xf32>
    %63 = arith.subf %59, %62 : vector<2x8x8xf32>
    %64 = math.exp %63 : vector<2x8x8xf32>
    %cst_22 = arith.constant dense<0.000000e+00> : vector<2x8xf32>
    %65 = vector.multi_reduction <add>, %64, %cst_22 [2] : vector<2x8x8xf32> to vector<2x8xf32>
    %66 = vector.shape_cast %65 : vector<2x8xf32> to vector<2x8x1xf32>
    "tpu.trace_start"() <{level = 10 : i32, message = "bqk,bkd->bqd"}> : () -> ()
    %cst_23 = arith.constant dense<0.000000e+00> : vector<2x8x64xf32>
    %67 = tpu.matmul %64, %58, %cst_23 {dimension_numbers = #tpu.dot_dimension_numbers<[2], [1], [1], [2], [0, 0, 0, 1, 1, 2], [0], [0]>} : vector<2x8x8xf32>, vector<2x8x64xf32>, vector<2x8x64xf32> -> vector<2x8x64xf32>
    "tpu.trace_stop"() : () -> ()
    %68 = tpu.reciprocal %66 : vector<2x8x1xf32> -> vector<2x8x1xf32>
    %69 = vector.broadcast %68 : vector<2x8x1xf32> to vector<2x8x64xf32>
    %70 = arith.mulf %67, %69 : vector<2x8x64xf32>
    %71 = vector.shape_cast %70 : vector<2x8x64xf32> to vector<16x64xf32>
    %c0_24 = arith.constant 0 : index
    %c192 = arith.constant 192 : index
    %72 = vector.load %arg6[%c0_24, %c192] : memref<16x512xf32, #tpu.memory_space<vmem>>, vector<16x64xf32>
    tpu.vector_store %arg6[%c0_24, %c192], %71 {strides = array<i32>} : memref<16x512xf32, #tpu.memory_space<vmem>>, vector<16x64xf32>,
    %73 = vector.extract_strided_slice %4 {offsets = [0, 0, 256], sizes = [2, 8, 64], strides = [1, 1, 1]} : vector<2x8x1536xf32> to vector<2x8x64xf32>
    %74 = vector.extract_strided_slice %4 {offsets = [0, 0, 768], sizes = [2, 8, 64], strides = [1, 1, 1]} : vector<2x8x1536xf32> to vector<2x8x64xf32>
    %75 = vector.extract_strided_slice %4 {offsets = [0, 0, 1280], sizes = [2, 8, 64], strides = [1, 1, 1]} : vector<2x8x1536xf32> to vector<2x8x64xf32>
    "tpu.trace_start"() <{level = 10 : i32, message = "bqd,bkd->bqk"}> : () -> ()
    %cst_25 = arith.constant dense<0.000000e+00> : vector<2x8x8xf32>
    %76 = tpu.matmul %73, %74, %cst_25 {dimension_numbers = #tpu.dot_dimension_numbers<[2], [2], [1], [1], [0, 0, 0, 1, 1, 1], [0], [0]>} : vector<2x8x64xf32>, vector<2x8x64xf32>, vector<2x8x8xf32> -> vector<2x8x8xf32>
    "tpu.trace_stop"() : () -> ()
    %cst_26 = arith.constant dense<0xFF800000> : vector<2x8xf32>
    %77 = vector.multi_reduction <maximumf>, %76, %cst_26 [2] : vector<2x8x8xf32> to vector<2x8xf32>
    %78 = vector.shape_cast %77 : vector<2x8xf32> to vector<2x8x1xf32>
    %79 = vector.broadcast %78 : vector<2x8x1xf32> to vector<2x8x8xf32>
    %80 = arith.subf %76, %79 : vector<2x8x8xf32>
    %81 = math.exp %80 : vector<2x8x8xf32>
    %cst_27 = arith.constant dense<0.000000e+00> : vector<2x8xf32>
    %82 = vector.multi_reduction <add>, %81, %cst_27 [2] : vector<2x8x8xf32> to vector<2x8xf32>
    %83 = vector.shape_cast %82 : vector<2x8xf32> to vector<2x8x1xf32>
    "tpu.trace_start"() <{level = 10 : i32, message = "bqk,bkd->bqd"}> : () -> ()
    %cst_28 = arith.constant dense<0.000000e+00> : vector<2x8x64xf32>
    %84 = tpu.matmul %81, %75, %cst_28 {dimension_numbers = #tpu.dot_dimension_numbers<[2], [1], [1], [2], [0, 0, 0, 1, 1, 2], [0], [0]>} : vector<2x8x8xf32>, vector<2x8x64xf32>, vector<2x8x64xf32> -> vector<2x8x64xf32>
    "tpu.trace_stop"() : () -> ()
    %85 = tpu.reciprocal %83 : vector<2x8x1xf32> -> vector<2x8x1xf32>
    %86 = vector.broadcast %85 : vector<2x8x1xf32> to vector<2x8x64xf32>
    %87 = arith.mulf %84, %86 : vector<2x8x64xf32>
    %88 = vector.shape_cast %87 : vector<2x8x64xf32> to vector<16x64xf32>
    %c0_29 = arith.constant 0 : index
    %c256 = arith.constant 256 : index
    %89 = vector.load %arg6[%c0_29, %c256] : memref<16x512xf32, #tpu.memory_space<vmem>>, vector<16x64xf32>
    tpu.vector_store %arg6[%c0_29, %c256], %88 {strides = array<i32>} : memref<16x512xf32, #tpu.memory_space<vmem>>, vector<16x64xf32>,
    %90 = vector.extract_strided_slice %4 {offsets = [0, 0, 320], sizes = [2, 8, 64], strides = [1, 1, 1]} : vector<2x8x1536xf32> to vector<2x8x64xf32>
    %91 = vector.extract_strided_slice %4 {offsets = [0, 0, 832], sizes = [2, 8, 64], strides = [1, 1, 1]} : vector<2x8x1536xf32> to vector<2x8x64xf32>
    %92 = vector.extract_strided_slice %4 {offsets = [0, 0, 1344], sizes = [2, 8, 64], strides = [1, 1, 1]} : vector<2x8x1536xf32> to vector<2x8x64xf32>
    "tpu.trace_start"() <{level = 10 : i32, message = "bqd,bkd->bqk"}> : () -> ()
    %cst_30 = arith.constant dense<0.000000e+00> : vector<2x8x8xf32>
    %93 = tpu.matmul %90, %91, %cst_30 {dimension_numbers = #tpu.dot_dimension_numbers<[2], [2], [1], [1], [0, 0, 0, 1, 1, 1], [0], [0]>} : vector<2x8x64xf32>, vector<2x8x64xf32>, vector<2x8x8xf32> -> vector<2x8x8xf32>
    "tpu.trace_stop"() : () -> ()
    %cst_31 = arith.constant dense<0xFF800000> : vector<2x8xf32>
    %94 = vector.multi_reduction <maximumf>, %93, %cst_31 [2] : vector<2x8x8xf32> to vector<2x8xf32>
    %95 = vector.shape_cast %94 : vector<2x8xf32> to vector<2x8x1xf32>
    %96 = vector.broadcast %95 : vector<2x8x1xf32> to vector<2x8x8xf32>
    %97 = arith.subf %93, %96 : vector<2x8x8xf32>
    %98 = math.exp %97 : vector<2x8x8xf32>
    %cst_32 = arith.constant dense<0.000000e+00> : vector<2x8xf32>
    %99 = vector.multi_reduction <add>, %98, %cst_32 [2] : vector<2x8x8xf32> to vector<2x8xf32>
    %100 = vector.shape_cast %99 : vector<2x8xf32> to vector<2x8x1xf32>
    "tpu.trace_start"() <{level = 10 : i32, message = "bqk,bkd->bqd"}> : () -> ()
    %cst_33 = arith.constant dense<0.000000e+00> : vector<2x8x64xf32>
    %101 = tpu.matmul %98, %92, %cst_33 {dimension_numbers = #tpu.dot_dimension_numbers<[2], [1], [1], [2], [0, 0, 0, 1, 1, 2], [0], [0]>} : vector<2x8x8xf32>, vector<2x8x64xf32>, vector<2x8x64xf32> -> vector<2x8x64xf32>
    "tpu.trace_stop"() : () -> ()
    %102 = tpu.reciprocal %100 : vector<2x8x1xf32> -> vector<2x8x1xf32>
    %103 = vector.broadcast %102 : vector<2x8x1xf32> to vector<2x8x64xf32>
    %104 = arith.mulf %101, %103 : vector<2x8x64xf32>
    %105 = vector.shape_cast %104 : vector<2x8x64xf32> to vector<16x64xf32>
    %c0_34 = arith.constant 0 : index
    %c320 = arith.constant 320 : index
    %106 = vector.load %arg6[%c0_34, %c320] : memref<16x512xf32, #tpu.memory_space<vmem>>, vector<16x64xf32>
    tpu.vector_store %arg6[%c0_34, %c320], %105 {strides = array<i32>} : memref<16x512xf32, #tpu.memory_space<vmem>>, vector<16x64xf32>,
    %107 = vector.extract_strided_slice %4 {offsets = [0, 0, 384], sizes = [2, 8, 64], strides = [1, 1, 1]} : vector<2x8x1536xf32> to vector<2x8x64xf32>
    %108 = vector.extract_strided_slice %4 {offsets = [0, 0, 896], sizes = [2, 8, 64], strides = [1, 1, 1]} : vector<2x8x1536xf32> to vector<2x8x64xf32>
    %109 = vector.extract_strided_slice %4 {offsets = [0, 0, 1408], sizes = [2, 8, 64], strides = [1, 1, 1]} : vector<2x8x1536xf32> to vector<2x8x64xf32>
    "tpu.trace_start"() <{level = 10 : i32, message = "bqd,bkd->bqk"}> : () -> ()
    %cst_35 = arith.constant dense<0.000000e+00> : vector<2x8x8xf32>
    %110 = tpu.matmul %107, %108, %cst_35 {dimension_numbers = #tpu.dot_dimension_numbers<[2], [2], [1], [1], [0, 0, 0, 1, 1, 1], [0], [0]>} : vector<2x8x64xf32>, vector<2x8x64xf32>, vector<2x8x8xf32> -> vector<2x8x8xf32>
    "tpu.trace_stop"() : () -> ()
    %cst_36 = arith.constant dense<0xFF800000> : vector<2x8xf32>
    %111 = vector.multi_reduction <maximumf>, %110, %cst_36 [2] : vector<2x8x8xf32> to vector<2x8xf32>
    %112 = vector.shape_cast %111 : vector<2x8xf32> to vector<2x8x1xf32>
    %113 = vector.broadcast %112 : vector<2x8x1xf32> to vector<2x8x8xf32>
    %114 = arith.subf %110, %113 : vector<2x8x8xf32>
    %115 = math.exp %114 : vector<2x8x8xf32>
    %cst_37 = arith.constant dense<0.000000e+00> : vector<2x8xf32>
    %116 = vector.multi_reduction <add>, %115, %cst_37 [2] : vector<2x8x8xf32> to vector<2x8xf32>
    %117 = vector.shape_cast %116 : vector<2x8xf32> to vector<2x8x1xf32>
    "tpu.trace_start"() <{level = 10 : i32, message = "bqk,bkd->bqd"}> : () -> ()
    %cst_38 = arith.constant dense<0.000000e+00> : vector<2x8x64xf32>
    %118 = tpu.matmul %115, %109, %cst_38 {dimension_numbers = #tpu.dot_dimension_numbers<[2], [1], [1], [2], [0, 0, 0, 1, 1, 2], [0], [0]>} : vector<2x8x8xf32>, vector<2x8x64xf32>, vector<2x8x64xf32> -> vector<2x8x64xf32>
    "tpu.trace_stop"() : () -> ()
    %119 = tpu.reciprocal %117 : vector<2x8x1xf32> -> vector<2x8x1xf32>
    %120 = vector.broadcast %119 : vector<2x8x1xf32> to vector<2x8x64xf32>
    %121 = arith.mulf %118, %120 : vector<2x8x64xf32>
    %122 = vector.shape_cast %121 : vector<2x8x64xf32> to vector<16x64xf32>
    %c0_39 = arith.constant 0 : index
    %c384 = arith.constant 384 : index
    %123 = vector.load %arg6[%c0_39, %c384] : memref<16x512xf32, #tpu.memory_space<vmem>>, vector<16x64xf32>
    tpu.vector_store %arg6[%c0_39, %c384], %122 {strides = array<i32>} : memref<16x512xf32, #tpu.memory_space<vmem>>, vector<16x64xf32>,
    %124 = vector.extract_strided_slice %4 {offsets = [0, 0, 448], sizes = [2, 8, 64], strides = [1, 1, 1]} : vector<2x8x1536xf32> to vector<2x8x64xf32>
    %125 = vector.extract_strided_slice %4 {offsets = [0, 0, 960], sizes = [2, 8, 64], strides = [1, 1, 1]} : vector<2x8x1536xf32> to vector<2x8x64xf32>
    %126 = vector.extract_strided_slice %4 {offsets = [0, 0, 1472], sizes = [2, 8, 64], strides = [1, 1, 1]} : vector<2x8x1536xf32> to vector<2x8x64xf32>
    "tpu.trace_start"() <{level = 10 : i32, message = "bqd,bkd->bqk"}> : () -> ()
    %cst_40 = arith.constant dense<0.000000e+00> : vector<2x8x8xf32>
    %127 = tpu.matmul %124, %125, %cst_40 {dimension_numbers = #tpu.dot_dimension_numbers<[2], [2], [1], [1], [0, 0, 0, 1, 1, 1], [0], [0]>} : vector<2x8x64xf32>, vector<2x8x64xf32>, vector<2x8x8xf32> -> vector<2x8x8xf32>
    "tpu.trace_stop"() : () -> ()
    %cst_41 = arith.constant dense<0xFF800000> : vector<2x8xf32>
    %128 = vector.multi_reduction <maximumf>, %127, %cst_41 [2] : vector<2x8x8xf32> to vector<2x8xf32>
    %129 = vector.shape_cast %128 : vector<2x8xf32> to vector<2x8x1xf32>
    %130 = vector.broadcast %129 : vector<2x8x1xf32> to vector<2x8x8xf32>
    %131 = arith.subf %127, %130 : vector<2x8x8xf32>
    %132 = math.exp %131 : vector<2x8x8xf32>
    %cst_42 = arith.constant dense<0.000000e+00> : vector<2x8xf32>
    %133 = vector.multi_reduction <add>, %132, %cst_42 [2] : vector<2x8x8xf32> to vector<2x8xf32>
    %134 = vector.shape_cast %133 : vector<2x8xf32> to vector<2x8x1xf32>
    "tpu.trace_start"() <{level = 10 : i32, message = "bqk,bkd->bqd"}> : () -> ()
    %cst_43 = arith.constant dense<0.000000e+00> : vector<2x8x64xf32>
    %135 = tpu.matmul %132, %126, %cst_43 {dimension_numbers = #tpu.dot_dimension_numbers<[2], [1], [1], [2], [0, 0, 0, 1, 1, 2], [0], [0]>} : vector<2x8x8xf32>, vector<2x8x64xf32>, vector<2x8x64xf32> -> vector<2x8x64xf32>
    "tpu.trace_stop"() : () -> ()
    %136 = tpu.reciprocal %134 : vector<2x8x1xf32> -> vector<2x8x1xf32>
    %137 = vector.broadcast %136 : vector<2x8x1xf32> to vector<2x8x64xf32>
    %138 = arith.mulf %135, %137 : vector<2x8x64xf32>
    %139 = vector.shape_cast %138 : vector<2x8x64xf32> to vector<16x64xf32>
    %c0_44 = arith.constant 0 : index
    %c448 = arith.constant 448 : index
    %140 = vector.load %arg6[%c0_44, %c448] : memref<16x512xf32, #tpu.memory_space<vmem>>, vector<16x64xf32>
    tpu.vector_store %arg6[%c0_44, %c448], %139 {strides = array<i32>} : memref<16x512xf32, #tpu.memory_space<vmem>>, vector<16x64xf32>,
    %c0_45 = arith.constant 0 : index
    %c0_46 = arith.constant 0 : index
    %141 = vector.load %arg6[%c0_45, %c0_46] : memref<16x512xf32, #tpu.memory_space<vmem>>, vector<16x512xf32>
    %c0_47 = arith.constant 0 : index
    %c0_48 = arith.constant 0 : index
    %142 = vector.load %arg3[%c0_47, %c0_48] : memref<512x32xf32, #tpu.memory_space<vmem>>, vector<512x32xf32>
    %cst_49 = arith.constant dense<0.000000e+00> : vector<16x32xf32>
    %143 = tpu.matmul %141, %142, %cst_49 {dimension_numbers = #tpu.dot_dimension_numbers<[1], [0], [0], [1], [0, 0, 1, 1], [], []>} : vector<16x512xf32>, vector<512x32xf32>, vector<16x32xf32> -> vector<16x32xf32>
    %c0_50 = arith.constant 0 : index
    %c0_51 = arith.constant 0 : index
    %144 = vector.load %arg4[%c0_50, %c0_51] : memref<1x32xf32, #tpu.memory_space<vmem>>, vector<1x32xf32>
    %145 = vector.broadcast %144 : vector<1x32xf32> to vector<16x32xf32>
    %146 = arith.addf %143, %145 : vector<16x32xf32>
    %147 = vector.shape_cast %146 : vector<16x32xf32> to vector<2x8x32xf32>
    %c0_52 = arith.constant 0 : index
    %c0_53 = arith.constant 0 : index
    %c0_54 = arith.constant 0 : index
    %148 = vector.load %arg5[%c0_52, %c0_53, %c0_54] : memref<2x8x32xf32, #tpu.memory_space<vmem>>, vector<2x8x32xf32>
    tpu.vector_store %arg5[%c0_52, %c0_53, %c0_54], %147 {strides = array<i32>} : memref<2x8x32xf32, #tpu.memory_space<vmem>>, vector<2x8x32xf32>,
    return
  }
  func.func @transform_0(%arg0: i32) -> (i32, i32, i32) {
    %c0_i32 = arith.constant 0 : i32
    %c0_i32_0 = arith.constant 0 : i32
    %c0_i32_1 = arith.constant 0 : i32
    return %arg0, %c0_i32, %c0_i32_0 : i32, i32, i32
  }
  func.func @transform_1(%arg0: i32) -> (i32, i32) {
    %c0_i32 = arith.constant 0 : i32
    %c0_i32_0 = arith.constant 0 : i32
    %c0_i32_1 = arith.constant 0 : i32
    return %c0_i32, %c0_i32_0 : i32, i32
  }
  func.func @transform_2(%arg0: i32) -> (i32, i32) {
    %c0_i32 = arith.constant 0 : i32
    %c0_i32_0 = arith.constant 0 : i32
    %c0_i32_1 = arith.constant 0 : i32
    return %c0_i32, %c0_i32_0 : i32, i32
  }
  func.func @transform_3(%arg0: i32) -> (i32, i32) {
    %c0_i32 = arith.constant 0 : i32
    %c0_i32_0 = arith.constant 0 : i32
    %c0_i32_1 = arith.constant 0 : i32
    return %c0_i32, %c0_i32_0 : i32, i32
  }
  func.func @transform_4(%arg0: i32) -> (i32, i32, i32) {
    %c0_i32 = arith.constant 0 : i32
    %c0_i32_0 = arith.constant 0 : i32
    %c0_i32_1 = arith.constant 0 : i32
    return %arg0, %c0_i32, %c0_i32_0 : i32, i32, i32
  }
}

</mosaic_0001>

<llo_original>
// kernel: tpu_custom_call.1
$region0: #{tpu_custom_call.1}
  #allocation0 [shape = 'u32[]', space=smem, size = 0x4, offset = 0x4, fixed_abs, tag = 'smem constant byte address 0x4 - core index']
  #allocation1 [shape = 'u32[72,128]{1,0:T(1,128)}', space=vmem, size = 0x9000, scoped, tag = 'internal scratch']
  #allocation2 [shape = 'f32[16,512]{1,0:T(8,128)}', space=vmem, size = 0x8000, scoped, tag = 'scratch operand']
  %s0 = inlined_call_operand.vmem [shape: f32[2,8,32], index: 0, kind: input, shape index: {}]
  %s1 = inlined_call_operand.vmem [shape: f32[32,1536], index: 1, kind: input, shape index: {}]
  %s2 = inlined_call_operand.vmem [shape: f32[512,32], index: 2, kind: input, shape index: {}]
  %s3 = inlined_call_operand.vmem [shape: f32[1,32], index: 3, kind: input, shape index: {}]
  %s4 = inlined_call_operand.hbm [shape: f32[2,8,32], index: 4, kind: output, shape index: {}]
  %s5 = sld [smem:[#allocation0]]
  $region26: #{tpu_custom_call.1} parent=0
    _
  %s7 = ssub.s32 1, %s5
  %s8 = scalar_select 0, %s7, %s5
  $region1: #{tpu_custom_call.1} parent=0
    #allocation3 [shape = 'u8[8192]{0}', space=vmem, size = 0x2000, scoped, tag = 'output window, operand 0, single buffered']
    #allocation4 [shape = 's32[1]{0}', space=sflag, size = 0x4, scoped, tag = 'scoped memory for tpu_custom_call.1']
    %9 = vsyncpa [#allocation4], 0
    // Predicated region
    $region2: #{tpu_custom_call.1} parent=1 // pred_check
      _
    $region3: #{tpu_custom_call.1} parent=1 // pred_check_branch
      %11 = sbr.rel (0) target = $region5
    $region4: #{tpu_custom_call.1} parent=1 // pred_region
      _
    $region5: #{tpu_custom_call.1} parent=1 // pred_fallthru
      _
    // Predicated region
    $region6: #{tpu_custom_call.1} parent=1 // pred_check
      _
    $region7: #{tpu_custom_call.1} parent=1 // pred_check_branch
      %13 = sbr.rel (0) target = $region9
    $region8: #{tpu_custom_call.1} parent=1 // pred_region
      _
    $region9: #{tpu_custom_call.1} parent=1 // pred_fallthru
      _
    // Predicated region
    $region10: #{tpu_custom_call.1} parent=1 // pred_check
      _
    $region11: #{tpu_custom_call.1} parent=1 // pred_check_branch
      %15 = sbr.rel (0) target = $region13
    $region12: #{tpu_custom_call.1} parent=1 // pred_region
      _
    $region13: #{tpu_custom_call.1} parent=1 // pred_fallthru
      _
    // Predicated region
    $region14: #{tpu_custom_call.1} parent=1 // pred_check
      _
    $region15: #{tpu_custom_call.1} parent=1 // pred_check_branch
      %17 = sbr.rel (0) target = $region17
    $region16: #{tpu_custom_call.1} parent=1 // pred_region
      _
    $region17: #{tpu_custom_call.1} parent=1 // pred_fallthru
      _
    %v18 = vld [vmem:[%s0] sm:$0xff]
    %v19 = vld [vmem:[%s0 + $0x8] sm:$0xff]
    %v20 = vld [vmem:[%s1] sm:$0xff]
    %v21 = vld [vmem:[%s1 + $0x8] sm:$0xff]
    %v22 = vld [vmem:[%s1 + $0x10] sm:$0xff]
    %v23 = vld [vmem:[%s1 + $0x18] sm:$0xff]
    %v24 = vld [vmem:[%s1 + $0x20] sm:$0xff]
    %v25 = vld [vmem:[%s1 + $0x28] sm:$0xff]
    %v26 = vld [vmem:[%s1 + $0x30] sm:$0xff]
    %v27 = vld [vmem:[%s1 + $0x38] sm:$0xff]
    %v28 = vld [vmem:[%s1 + $0x40] sm:$0xff]
    %v29 = vld [vmem:[%s1 + $0x48] sm:$0xff]
    %v30 = vld [vmem:[%s1 + $0x50] sm:$0xff]
    %v31 = vld [vmem:[%s1 + $0x58] sm:$0xff]
    %v32 = vld [vmem:[%s1 + $0x60] sm:$0xff]
    %v33 = vld [vmem:[%s1 + $0x68] sm:$0xff]
    %v34 = vld [vmem:[%s1 + $0x70] sm:$0xff]
    %v35 = vld [vmem:[%s1 + $0x78] sm:$0xff]
    %v36 = vld [vmem:[%s1 + $0x80] sm:$0xff]
    %v37 = vld [vmem:[%s1 + $0x88] sm:$0xff]
    %v38 = vld [vmem:[%s1 + $0x90] sm:$0xff]
    %v39 = vld [vmem:[%s1 + $0x98] sm:$0xff]
    %v40 = vld [vmem:[%s1 + $0xa0] sm:$0xff]
    %v41 = vld [vmem:[%s1 + $0xa8] sm:$0xff]
    %v42 = vld [vmem:[%s1 + $0xb0] sm:$0xff]
    %v43 = vld [vmem:[%s1 + $0xb8] sm:$0xff]
    %v44 = vld [vmem:[%s1 + $0xc0] sm:$0xff]
    %v45 = vld [vmem:[%s1 + $0xc8] sm:$0xff]
    %v46 = vld [vmem:[%s1 + $0xd0] sm:$0xff]
    %v47 = vld [vmem:[%s1 + $0xd8] sm:$0xff]
    %v48 = vld [vmem:[%s1 + $0xe0] sm:$0xff]
    %v49 = vld [vmem:[%s1 + $0xe8] sm:$0xff]
    %v50 = vld [vmem:[%s1 + $0xf0] sm:$0xff]
    %v51 = vld [vmem:[%s1 + $0xf8] sm:$0xff]
    %v52 = vld [vmem:[%s1 + $0x100] sm:$0xff]
    %v53 = vld [vmem:[%s1 + $0x108] sm:$0xff]
    %v54 = vld [vmem:[%s1 + $0x110] sm:$0xff]
    %v55 = vld [vmem:[%s1 + $0x118] sm:$0xff]
    %v56 = vld [vmem:[%s1 + $0x120] sm:$0xff]
    %v57 = vld [vmem:[%s1 + $0x128] sm:$0xff]
    %v58 = vld [vmem:[%s1 + $0x130] sm:$0xff]
    %v59 = vld [vmem:[%s1 + $0x138] sm:$0xff]
    %v60 = vld [vmem:[%s1 + $0x140] sm:$0xff]
    %v61 = vld [vmem:[%s1 + $0x148] sm:$0xff]
    %v62 = vld [vmem:[%s1 + $0x150] sm:$0xff]
    %v63 = vld [vmem:[%s1 + $0x158] sm:$0xff]
    %v64 = vld [vmem:[%s1 + $0x160] sm:$0xff]
    %v65 = vld [vmem:[%s1 + $0x168] sm:$0xff]
    %v66 = vld [vmem:[%s1 + $0x170] sm:$0xff]
    %v67 = vld [vmem:[%s1 + $0x178] sm:$0xff]
    %vm68 = vcmask 261120
    %v70 = vsel %vm68, %v18, 0
    %v73 = vsel %vm68, %v19, 0
    %75 = vmatpush.msra.mxu0 0.0
    %76 = vmatpush.msra.mxu0 0.0
    %77 = vmatpush.msra.mxu0 0.0
    %78 = vmatpush.msra.mxu0 0.0
    %79 = vmatpush.msra.mxu0 0.0
    %80 = vmatpush.msra.mxu0 0.0
    %81 = vmatpush.msra.mxu0 0.0
    %82 = vmatpush.msra.mxu0 0.0
    %83 = vmatpush.msra.mxu0 0.0
    %84 = vmatpush.msra.mxu0 0.0
    %85 = vmatpush.msra.mxu0 0.0
    %86 = vmatpush.msra.mxu0 0.0
    %87 = vmatpush.msra.mxu0 %v56
    %88 = vmatpush.msra.mxu0 %v44
    %89 = vmatpush.msra.mxu0 %v32
    %90 = vmatpush.msra.mxu0 %v20
    %91 = vmatmul.f32.gmra.mxu0 %v70
    %v92 = vpop.f32.mrf.mxu0
    %v93 = vadd.f32 0.0, %v92
    %94 = vmatmul.f32.gmra.mxu0 %v73
    %v95 = vpop.f32.mrf.mxu0
    %v96 = vadd.f32 0.0, %v95
    %97 = vdwg.mxu0
    %98 = vmatpush.msra.mxu0 0.0
    %99 = vmatpush.msra.mxu0 0.0
    %100 = vmatpush.msra.mxu0 0.0
    %101 = vmatpush.msra.mxu0 0.0
    %102 = vmatpush.msra.mxu0 0.0
    %103 = vmatpush.msra.mxu0 0.0
    %104 = vmatpush.msra.mxu0 0.0
    %105 = vmatpush.msra.mxu0 0.0
    %106 = vmatpush.msra.mxu0 0.0
    %107 = vmatpush.msra.mxu0 0.0
    %108 = vmatpush.msra.mxu0 0.0
    %109 = vmatpush.msra.mxu0 0.0
    %110 = vmatpush.msra.mxu0 %v57
    %111 = vmatpush.msra.mxu0 %v45
    %112 = vmatpush.msra.mxu0 %v33
    %113 = vmatpush.msra.mxu0 %v21
    %114 = vmatmul.f32.gmra.mxu0 %v70
    %v115 = vpop.f32.mrf.mxu0
    %v116 = vadd.f32 0.0, %v115
    %117 = vmatmul.f32.gmra.mxu0 %v73
    %v118 = vpop.f32.mrf.mxu0
    %v119 = vadd.f32 0.0, %v118
    %120 = vdwg.mxu0
    %121 = vmatpush.msra.mxu0 0.0
    %122 = vmatpush.msra.mxu0 0.0
    %123 = vmatpush.msra.mxu0 0.0
    %124 = vmatpush.msra.mxu0 0.0
    %125 = vmatpush.msra.mxu0 0.0
    %126 = vmatpush.msra.mxu0 0.0
    %127 = vmatpush.msra.mxu0 0.0
    %128 = vmatpush.msra.mxu0 0.0
    %129 = vmatpush.msra.mxu0 0.0
    %130 = vmatpush.msra.mxu0 0.0
    %131 = vmatpush.msra.mxu0 0.0
    %132 = vmatpush.msra.mxu0 0.0
    %133 = vmatpush.msra.mxu0 %v58
    %134 = vmatpush.msra.mxu0 %v46
    %135 = vmatpush.msra.mxu0 %v34
    %136 = vmatpush.msra.mxu0 %v22
    %137 = vmatmul.f32.gmra.mxu0 %v70
    %v138 = vpop.f32.mrf.mxu0
    %v139 = vadd.f32 0.0, %v138
    %140 = vmatmul.f32.gmra.mxu0 %v73
    %v141 = vpop.f32.mrf.mxu0
    %v142 = vadd.f32 0.0, %v141
    %143 = vdwg.mxu0
    %144 = vmatpush.msra.mxu0 0.0
    %145 = vmatpush.msra.mxu0 0.0
    %146 = vmatpush.msra.mxu0 0.0
    %147 = vmatpush.msra.mxu0 0.0
    %148 = vmatpush.msra.mxu0 0.0
    %149 = vmatpush.msra.mxu0 0.0
    %150 = vmatpush.msra.mxu0 0.0
    %151 = vmatpush.msra.mxu0 0.0
    %152 = vmatpush.msra.mxu0 0.0
    %153 = vmatpush.msra.mxu0 0.0
    %154 = vmatpush.msra.mxu0 0.0
    %155 = vmatpush.msra.mxu0 0.0
    %156 = vmatpush.msra.mxu0 %v59
    %157 = vmatpush.msra.mxu0 %v47
    %158 = vmatpush.msra.mxu0 %v35
    %159 = vmatpush.msra.mxu0 %v23
    %160 = vmatmul.f32.gmra.mxu0 %v70
    %v161 = vpop.f32.mrf.mxu0
    %v162 = vadd.f32 0.0, %v161
    %163 = vmatmul.f32.gmra.mxu0 %v73
    %v164 = vpop.f32.mrf.mxu0
    %v165 = vadd.f32 0.0, %v164
    %166 = vdwg.mxu0
    %167 = vmatpush.msra.mxu0 0.0
    %168 = vmatpush.msra.mxu0 0.0
    %169 = vmatpush.msra.mxu0 0.0
    %170 = vmatpush.msra.mxu0 0.0
    %171 = vmatpush.msra.mxu0 0.0
    %172 = vmatpush.msra.mxu0 0.0
    %173 = vmatpush.msra.mxu0 0.0
    %174 = vmatpush.msra.mxu0 0.0
    %175 = vmatpush.msra.mxu0 0.0
    %176 = vmatpush.msra.mxu0 0.0
    %177 = vmatpush.msra.mxu0 0.0
    %178 = vmatpush.msra.mxu0 0.0
    %179 = vmatpush.msra.mxu0 %v60
    %180 = vmatpush.msra.mxu0 %v48
    %181 = vmatpush.msra.mxu0 %v36
    %182 = vmatpush.msra.mxu0 %v24
    %183 = vmatmul.f32.gmra.mxu0 %v70
    %v184 = vpop.f32.mrf.mxu0
    %v185 = vadd.f32 0.0, %v184
    %186 = vmatmul.f32.gmra.mxu0 %v73
    %v187 = vpop.f32.mrf.mxu0
    %v188 = vadd.f32 0.0, %v187
    %189 = vdwg.mxu0
    %190 = vmatpush.msra.mxu0 0.0
    %191 = vmatpush.msra.mxu0 0.0
    %192 = vmatpush.msra.mxu0 0.0
    %193 = vmatpush.msra.mxu0 0.0
    %194 = vmatpush.msra.mxu0 0.0
    %195 = vmatpush.msra.mxu0 0.0
    %196 = vmatpush.msra.mxu0 0.0
    %197 = vmatpush.msra.mxu0 0.0
    %198 = vmatpush.msra.mxu0 0.0
    %199 = vmatpush.msra.mxu0 0.0
    %200 = vmatpush.msra.mxu0 0.0
    %201 = vmatpush.msra.mxu0 0.0
    %202 = vmatpush.msra.mxu0 %v61
    %203 = vmatpush.msra.mxu0 %v49
    %204 = vmatpush.msra.mxu0 %v37
    %205 = vmatpush.msra.mxu0 %v25
    %206 = vmatmul.f32.gmra.mxu0 %v70
    %v207 = vpop.f32.mrf.mxu0
    %v208 = vadd.f32 0.0, %v207
    %209 = vmatmul.f32.gmra.mxu0 %v73
    %v210 = vpop.f32.mrf.mxu0
    %v211 = vadd.f32 0.0, %v210
    %212 = vdwg.mxu0
    %213 = vmatpush.msra.mxu0 0.0
    %214 = vmatpush.msra.mxu0 0.0
    %215 = vmatpush.msra.mxu0 0.0
    %216 = vmatpush.msra.mxu0 0.0
    %217 = vmatpush.msra.mxu0 0.0
    %218 = vmatpush.msra.mxu0 0.0
    %219 = vmatpush.msra.mxu0 0.0
    %220 = vmatpush.msra.mxu0 0.0
    %221 = vmatpush.msra.mxu0 0.0
    %222 = vmatpush.msra.mxu0 0.0
    %223 = vmatpush.msra.mxu0 0.0
    %224 = vmatpush.msra.mxu0 0.0
    %225 = vmatpush.msra.mxu0 %v62
    %226 = vmatpush.msra.mxu0 %v50
    %227 = vmatpush.msra.mxu0 %v38
    %228 = vmatpush.msra.mxu0 %v26
    %229 = vmatmul.f32.gmra.mxu0 %v70
    %v230 = vpop.f32.mrf.mxu0
    %v231 = vadd.f32 0.0, %v230
    %232 = vmatmul.f32.gmra.mxu0 %v73
    %v233 = vpop.f32.mrf.mxu0
    %v234 = vadd.f32 0.0, %v233
    %235 = vdwg.mxu0
    %236 = vmatpush.msra.mxu0 0.0
    %237 = vmatpush.msra.mxu0 0.0
    %238 = vmatpush.msra.mxu0 0.0
    %239 = vmatpush.msra.mxu0 0.0
    %240 = vmatpush.msra.mxu0 0.0
    %241 = vmatpush.msra.mxu0 0.0
    %242 = vmatpush.msra.mxu0 0.0
    %243 = vmatpush.msra.mxu0 0.0
    %244 = vmatpush.msra.mxu0 0.0
    %245 = vmatpush.msra.mxu0 0.0
    %246 = vmatpush.msra.mxu0 0.0
    %247 = vmatpush.msra.mxu0 0.0
    %248 = vmatpush.msra.mxu0 %v63
    %249 = vmatpush.msra.mxu0 %v51
    %250 = vmatpush.msra.mxu0 %v39
    %251 = vmatpush.msra.mxu0 %v27
    %252 = vmatmul.f32.gmra.mxu0 %v70
    %v253 = vpop.f32.mrf.mxu0
    %v254 = vadd.f32 0.0, %v253
    %255 = vmatmul.f32.gmra.mxu0 %v73
    %v256 = vpop.f32.mrf.mxu0
    %v257 = vadd.f32 0.0, %v256
    %258 = vdwg.mxu0
    %259 = vmatpush.msra.mxu0 0.0
    %260 = vmatpush.msra.mxu0 0.0
    %261 = vmatpush.msra.mxu0 0.0
    %262 = vmatpush.msra.mxu0 0.0
    %263 = vmatpush.msra.mxu0 0.0
    %264 = vmatpush.msra.mxu0 0.0
    %265 = vmatpush.msra.mxu0 0.0
    %266 = vmatpush.msra.mxu0 0.0
    %267 = vmatpush.msra.mxu0 0.0
    %268 = vmatpush.msra.mxu0 0.0
    %269 = vmatpush.msra.mxu0 0.0
    %270 = vmatpush.msra.mxu0 0.0
    %271 = vmatpush.msra.mxu0 %v64
    %272 = vmatpush.msra.mxu0 %v52
    %273 = vmatpush.msra.mxu0 %v40
    %274 = vmatpush.msra.mxu0 %v28
    %275 = vmatmul.f32.gmra.mxu0 %v70
    %v276 = vpop.f32.mrf.mxu0
    %v277 = vadd.f32 0.0, %v276
    %278 = vmatmul.f32.gmra.mxu0 %v73
    %v279 = vpop.f32.mrf.mxu0
    %v280 = vadd.f32 0.0, %v279
    %281 = vdwg.mxu0
    %282 = vmatpush.msra.mxu0 0.0
    %283 = vmatpush.msra.mxu0 0.0
    %284 = vmatpush.msra.mxu0 0.0
    %285 = vmatpush.msra.mxu0 0.0
    %286 = vmatpush.msra.mxu0 0.0
    %287 = vmatpush.msra.mxu0 0.0
    %288 = vmatpush.msra.mxu0 0.0
    %289 = vmatpush.msra.mxu0 0.0
    %290 = vmatpush.msra.mxu0 0.0
    %291 = vmatpush.msra.mxu0 0.0
    %292 = vmatpush.msra.mxu0 0.0
    %293 = vmatpush.msra.mxu0 0.0
    %294 = vmatpush.msra.mxu0 %v65
    %295 = vmatpush.msra.mxu0 %v53
    %296 = vmatpush.msra.mxu0 %v41
    %297 = vmatpush.msra.mxu0 %v29
    %298 = vmatmul.f32.gmra.mxu0 %v70
    %v299 = vpop.f32.mrf.mxu0
    %v300 = vadd.f32 0.0, %v299
    %301 = vmatmul.f32.gmra.mxu0 %v73
    %v302 = vpop.f32.mrf.mxu0
    %v303 = vadd.f32 0.0, %v302
    %304 = vdwg.mxu0
    %305 = vmatpush.msra.mxu0 0.0
    %306 = vmatpush.msra.mxu0 0.0
    %307 = vmatpush.msra.mxu0 0.0
    %308 = vmatpush.msra.mxu0 0.0
    %309 = vmatpush.msra.mxu0 0.0
    %310 = vmatpush.msra.mxu0 0.0
    %311 = vmatpush.msra.mxu0 0.0
    %312 = vmatpush.msra.mxu0 0.0
    %313 = vmatpush.msra.mxu0 0.0
    %314 = vmatpush.msra.mxu0 0.0
    %315 = vmatpush.msra.mxu0 0.0
    %316 = vmatpush.msra.mxu0 0.0
    %317 = vmatpush.msra.mxu0 %v66
    %318 = vmatpush.msra.mxu0 %v54
    %319 = vmatpush.msra.mxu0 %v42
    %320 = vmatpush.msra.mxu0 %v30
    %321 = vmatmul.f32.gmra.mxu0 %v70
    %v322 = vpop.f32.mrf.mxu0
    %v323 = vadd.f32 0.0, %v322
    %324 = vmatmul.f32.gmra.mxu0 %v73
    %v325 = vpop.f32.mrf.mxu0
    %v326 = vadd.f32 0.0, %v325
    %327 = vdwg.mxu0
    %328 = vmatpush.msra.mxu0 0.0
    %329 = vmatpush.msra.mxu0 0.0
    %330 = vmatpush.msra.mxu0 0.0
    %331 = vmatpush.msra.mxu0 0.0
    %332 = vmatpush.msra.mxu0 0.0
    %333 = vmatpush.msra.mxu0 0.0
    %334 = vmatpush.msra.mxu0 0.0
    %335 = vmatpush.msra.mxu0 0.0
    %336 = vmatpush.msra.mxu0 0.0
    %337 = vmatpush.msra.mxu0 0.0
    %338 = vmatpush.msra.mxu0 0.0
    %339 = vmatpush.msra.mxu0 0.0
    %340 = vmatpush.msra.mxu0 %v67
    %341 = vmatpush.msra.mxu0 %v55
    %342 = vmatpush.msra.mxu0 %v43
    %343 = vmatpush.msra.mxu0 %v31
    %344 = vmatmul.f32.gmra.mxu0 %v70
    %v345 = vpop.f32.mrf.mxu0
    %v346 = vadd.f32 0.0, %v345
    %347 = vmatmul.f32.gmra.mxu0 %v73
    %v348 = vpop.f32.mrf.mxu0
    %v349 = vadd.f32 0.0, %v348
    %350 = vdwg.mxu0
    %vm351 = vcmask 523264
    %v353 = vsel %vm351, %v93, 0
    %v356 = vsel %vm351, %v185, 0
    %358 = vmatpush.xpose.msra.mxu0 0.0
    %359 = vmatpush.xpose.msra.mxu0 0.0
    %360 = vmatpush.xpose.msra.mxu0 0.0
    %361 = vmatpush.xpose.msra.mxu0 0.0
    %362 = vmatpush.xpose.msra.mxu0 0.0
    %363 = vmatpush.xpose.msra.mxu0 0.0
    %364 = vmatpush.xpose.msra.mxu0 0.0
    %365 = vmatpush.xpose.msra.mxu0 0.0
    %366 = vmatpush.xpose.msra.mxu0 0.0
    %367 = vmatpush.xpose.msra.mxu0 0.0
    %368 = vmatpush.xpose.msra.mxu0 0.0
    %369 = vmatpush.xpose.msra.mxu0 0.0
    %370 = vmatpush.xpose.msra.mxu0 0.0
    %371 = vmatpush.xpose.msra.mxu0 0.0
    %372 = vmatpush.xpose.msra.mxu0 0.0
    %373 = vmatpush.xpose.msra.mxu0 %v356
    %374 = vmatmul.f32.gmra.mxu0 %v353
    %v375 = vpop.f32.mrf.mxu0
    %v376 = vadd.f32 0.0, %v375
    %377 = vdwg.mxu0
    %v379 = vsel %vm351, %v96, 0
    %v382 = vsel %vm351, %v188, 0
    %384 = vmatpush.xpose.msra.mxu0 0.0
    %385 = vmatpush.xpose.msra.mxu0 0.0
    %386 = vmatpush.xpose.msra.mxu0 0.0
    %387 = vmatpush.xpose.msra.mxu0 0.0
    %388 = vmatpush.xpose.msra.mxu0 0.0
    %389 = vmatpush.xpose.msra.mxu0 0.0
    %390 = vmatpush.xpose.msra.mxu0 0.0
    %391 = vmatpush.xpose.msra.mxu0 0.0
    %392 = vmatpush.xpose.msra.mxu0 0.0
    %393 = vmatpush.xpose.msra.mxu0 0.0
    %394 = vmatpush.xpose.msra.mxu0 0.0
    %395 = vmatpush.xpose.msra.mxu0 0.0
    %396 = vmatpush.xpose.msra.mxu0 0.0
    %397 = vmatpush.xpose.msra.mxu0 0.0
    %398 = vmatpush.xpose.msra.mxu0 0.0
    %399 = vmatpush.xpose.msra.mxu0 %v382
    %400 = vmatmul.f32.gmra.mxu0 %v379
    %v401 = vpop.f32.mrf.mxu0
    %v402 = vadd.f32 0.0, %v401
    %403 = vdwg.mxu0
    %vm404 = vcmask 64512
    %v405 = vsel %vm404, %v376, -inf
    %406 = vmax.xlane.f32.xlu0 %v405
    %v407 = vpop.xlane.xlu0 %406
    %v408 = vsel %vm404, %v402, -inf
    %409 = vmax.xlane.f32.xlu0 %v408
    %v410 = vpop.xlane.xlu0 %409
    %v411 = vsub.f32 %v376, %v407
    %v412 = vsub.f32 %v402, %v410
    %v413 = vmul.f32 %v411, 1.442695
    %v414 = vpow.pop %v413
    %v415 = vmul.f32 %v412, 1.442695
    %v416 = vpow.pop %v415
    %v417 = vsel %vm404, %v414, 0.0
    %418 = vadd.xlane.f32.xlu0 %v417
    %v419 = vpop.xlane.xlu0 %418
    %v420 = vsel %vm404, %v416, 0.0
    %421 = vadd.xlane.f32.xlu0 %v420
    %v422 = vpop.xlane.xlu0 %421
    %v424 = vsel %vm404, %v414, 0
    %426 = vmatpush.msra.mxu0 0.0
    %427 = vmatpush.msra.mxu0 0.0
    %428 = vmatpush.msra.mxu0 0.0
    %429 = vmatpush.msra.mxu0 0.0
    %430 = vmatpush.msra.mxu0 0.0
    %431 = vmatpush.msra.mxu0 0.0
    %432 = vmatpush.msra.mxu0 0.0
    %433 = vmatpush.msra.mxu0 0.0
    %434 = vmatpush.msra.mxu0 0.0
    %435 = vmatpush.msra.mxu0 0.0
    %436 = vmatpush.msra.mxu0 0.0
    %437 = vmatpush.msra.mxu0 0.0
    %438 = vmatpush.msra.mxu0 0.0
    %439 = vmatpush.msra.mxu0 0.0
    %440 = vmatpush.msra.mxu0 0.0
    %441 = vmatpush.msra.mxu0 %v277
    %442 = vmatmul.f32.gmra.mxu0 %v424
    %v443 = vpop.f32.mrf.mxu0
    %v444 = vadd.f32 0.0, %v443
    %445 = vdwg.mxu0
    %v447 = vsel %vm404, %v416, 0
    %449 = vmatpush.msra.mxu0 0.0
    %450 = vmatpush.msra.mxu0 0.0
    %451 = vmatpush.msra.mxu0 0.0
    %452 = vmatpush.msra.mxu0 0.0
    %453 = vmatpush.msra.mxu0 0.0
    %454 = vmatpush.msra.mxu0 0.0
    %455 = vmatpush.msra.mxu0 0.0
    %456 = vmatpush.msra.mxu0 0.0
    %457 = vmatpush.msra.mxu0 0.0
    %458 = vmatpush.msra.mxu0 0.0
    %459 = vmatpush.msra.mxu0 0.0
    %460 = vmatpush.msra.mxu0 0.0
    %461 = vmatpush.msra.mxu0 0.0
    %462 = vmatpush.msra.mxu0 0.0
    %463 = vmatpush.msra.mxu0 0.0
    %464 = vmatpush.msra.mxu0 %v280
    %465 = vmatmul.f32.gmra.mxu0 %v447
    %v466 = vpop.f32.mrf.mxu0
    %v467 = vadd.f32 0.0, %v466
    %468 = vdwg.mxu0
    %v469 = vrcp.pop %v419
    %v470 = vmul.f32 %v419, %v469
    %v471 = vsub.f32 1.0, %v470
    %v472 = vmul.f32 %v469, %v471
    %v473 = vadd.f32 %v469, %v472
    %vm474 = vweird.f32 %v419
    %vm475 = vweird.f32 %v469
    %vm476 = vmor %vm474, %vm475
    %v477 = vsel %vm476, %v469, %v473
    %v478 = vand.u32 2147483647, %v419
    %vm479 = vcmp.eq.f32.partialorder %v478, 8.507059e+37
    %v480 = vand.u32 %v419, 2147483648
    %v481 = vor.u32 1.1754944e-38, %v480
    %v482 = vsel %vm479, %v481, %v477
    %v483 = vrcp.pop %v422
    %v484 = vmul.f32 %v422, %v483
    %v485 = vsub.f32 1.0, %v484
    %v486 = vmul.f32 %v483, %v485
    %v487 = vadd.f32 %v483, %v486
    %vm488 = vweird.f32 %v422
    %vm489 = vweird.f32 %v483
    %vm490 = vmor %vm488, %vm489
    %v491 = vsel %vm490, %v483, %v487
    %v492 = vand.u32 2147483647, %v422
    %vm493 = vcmp.eq.f32.partialorder %v492, 8.507059e+37
    %v494 = vand.u32 %v422, 2147483648
    %v495 = vor.u32 1.1754944e-38, %v494
    %v496 = vsel %vm493, %v495, %v491
    %v497 = vmul.f32 %v444, %v482
    %v498 = vmul.f32 %v467, %v496
    %499 = vst.msk [vmem:[#allocation2] sm:$0xff] %vm351, %v497
    %500 = vst.msk [vmem:[#allocation2 + $0x20] sm:$0xff] %vm351, %v498
    %501 = vrot.lane.b32.xlu0 %v93, 64
    %v502 = vpop.permute.xlu0 %501
    %503 = vrot.lane.b32.xlu0 %v185, 64
    %v504 = vpop.permute.xlu0 %503
    %v505 = vsel %vm351, %v502, 0
    %v507 = vsel %vm351, %v504, 0
    %509 = vmatpush.xpose.msra.mxu0 0.0
    %510 = vmatpush.xpose.msra.mxu0 0.0
    %511 = vmatpush.xpose.msra.mxu0 0.0
    %512 = vmatpush.xpose.msra.mxu0 0.0
    %513 = vmatpush.xpose.msra.mxu0 0.0
    %514 = vmatpush.xpose.msra.mxu0 0.0
    %515 = vmatpush.xpose.msra.mxu0 0.0
    %516 = vmatpush.xpose.msra.mxu0 0.0
    %517 = vmatpush.xpose.msra.mxu0 0.0
    %518 = vmatpush.xpose.msra.mxu0 0.0
    %519 = vmatpush.xpose.msra.mxu0 0.0
    %520 = vmatpush.xpose.msra.mxu0 0.0
    %521 = vmatpush.xpose.msra.mxu0 0.0
    %522 = vmatpush.xpose.msra.mxu0 0.0
    %523 = vmatpush.xpose.msra.mxu0 0.0
    %524 = vmatpush.xpose.msra.mxu0 %v507
    %525 = vmatmul.f32.gmra.mxu0 %v505
    %v526 = vpop.f32.mrf.mxu0
    %v527 = vadd.f32 0.0, %v526
    %528 = vdwg.mxu0
    %529 = vrot.lane.b32.xlu0 %v96, 64
    %v530 = vpop.permute.xlu0 %529
    %531 = vrot.lane.b32.xlu0 %v188, 64
    %v532 = vpop.permute.xlu0 %531
    %v533 = vsel %vm351, %v530, 0
    %v535 = vsel %vm351, %v532, 0
    %537 = vmatpush.xpose.msra.mxu0 0.0
    %538 = vmatpush.xpose.msra.mxu0 0.0
    %539 = vmatpush.xpose.msra.mxu0 0.0
    %540 = vmatpush.xpose.msra.mxu0 0.0
    %541 = vmatpush.xpose.msra.mxu0 0.0
    %542 = vmatpush.xpose.msra.mxu0 0.0
    %543 = vmatpush.xpose.msra.mxu0 0.0
    %544 = vmatpush.xpose.msra.mxu0 0.0
    %545 = vmatpush.xpose.msra.mxu0 0.0
    %546 = vmatpush.xpose.msra.mxu0 0.0
    %547 = vmatpush.xpose.msra.mxu0 0.0
    %548 = vmatpush.xpose.msra.mxu0 0.0
    %549 = vmatpush.xpose.msra.mxu0 0.0
    %550 = vmatpush.xpose.msra.mxu0 0.0
    %551 = vmatpush.xpose.msra.mxu0 0.0
    %552 = vmatpush.xpose.msra.mxu0 %v535
    %553 = vmatmul.f32.gmra.mxu0 %v533
    %v554 = vpop.f32.mrf.mxu0
    %v555 = vadd.f32 0.0, %v554
    %556 = vdwg.mxu0
    %v557 = vsel %vm404, %v527, -inf
    %558 = vmax.xlane.f32.xlu0 %v557
    %v559 = vpop.xlane.xlu0 %558
    %v560 = vsel %vm404, %v555, -inf
    %561 = vmax.xlane.f32.xlu0 %v560
    %v562 = vpop.xlane.xlu0 %561
    %v563 = vsub.f32 %v527, %v559
    %v564 = vsub.f32 %v555, %v562
    %v565 = vmul.f32 %v563, 1.442695
    %v566 = vpow.pop %v565
    %v567 = vmul.f32 %v564, 1.442695
    %v568 = vpow.pop %v567
    %v569 = vsel %vm404, %v566, 0.0
    %570 = vadd.xlane.f32.xlu0 %v569
    %v571 = vpop.xlane.xlu0 %570
    %v572 = vsel %vm404, %v568, 0.0
    %573 = vadd.xlane.f32.xlu0 %v572
    %v574 = vpop.xlane.xlu0 %573
    %576 = vrot.lane.b32.xlu0 %v277, 64
    %v577 = vpop.permute.xlu0 %576
    %v580 = vsel %vm404, %v566, 0
    %582 = vmatpush.msra.mxu0 0.0
    %583 = vmatpush.msra.mxu0 0.0
    %584 = vmatpush.msra.mxu0 0.0
    %585 = vmatpush.msra.mxu0 0.0
    %586 = vmatpush.msra.mxu0 0.0
    %587 = vmatpush.msra.mxu0 0.0
    %588 = vmatpush.msra.mxu0 0.0
    %589 = vmatpush.msra.mxu0 0.0
    %590 = vmatpush.msra.mxu0 0.0
    %591 = vmatpush.msra.mxu0 0.0
    %592 = vmatpush.msra.mxu0 0.0
    %593 = vmatpush.msra.mxu0 0.0
    %594 = vmatpush.msra.mxu0 0.0
    %595 = vmatpush.msra.mxu0 0.0
    %596 = vmatpush.msra.mxu0 0.0
    %597 = vmatpush.msra.mxu0 %v577
    %598 = vmatmul.f32.gmra.mxu0 %v580
    %v599 = vpop.f32.mrf.mxu0
    %v600 = vadd.f32 0.0, %v599
    %601 = vdwg.mxu0
    %603 = vrot.lane.b32.xlu0 %v280, 64
    %v604 = vpop.permute.xlu0 %603
    %v607 = vsel %vm404, %v568, 0
    %609 = vmatpush.msra.mxu0 0.0
    %610 = vmatpush.msra.mxu0 0.0
    %611 = vmatpush.msra.mxu0 0.0
    %612 = vmatpush.msra.mxu0 0.0
    %613 = vmatpush.msra.mxu0 0.0
    %614 = vmatpush.msra.mxu0 0.0
    %615 = vmatpush.msra.mxu0 0.0
    %616 = vmatpush.msra.mxu0 0.0
    %617 = vmatpush.msra.mxu0 0.0
    %618 = vmatpush.msra.mxu0 0.0
    %619 = vmatpush.msra.mxu0 0.0
    %620 = vmatpush.msra.mxu0 0.0
    %621 = vmatpush.msra.mxu0 0.0
    %622 = vmatpush.msra.mxu0 0.0
    %623 = vmatpush.msra.mxu0 0.0
    %624 = vmatpush.msra.mxu0 %v604
    %625 = vmatmul.f32.gmra.mxu0 %v607
    %v626 = vpop.f32.mrf.mxu0
    %v627 = vadd.f32 0.0, %v626
    %628 = vdwg.mxu0
    %v629 = vrcp.pop %v571
    %v630 = vmul.f32 %v571, %v629
    %v631 = vsub.f32 1.0, %v630
    %v632 = vmul.f32 %v629, %v631
    %v633 = vadd.f32 %v629, %v632
    %vm634 = vweird.f32 %v571
    %vm635 = vweird.f32 %v629
    %vm636 = vmor %vm634, %vm635
    %v637 = vsel %vm636, %v629, %v633
    %v638 = vand.u32 2147483647, %v571
    %vm639 = vcmp.eq.f32.partialorder %v638, 8.507059e+37
    %v640 = vand.u32 %v571, 2147483648
    %v641 = vor.u32 1.1754944e-38, %v640
    %v642 = vsel %vm639, %v641, %v637
    %v643 = vrcp.pop %v574
    %v644 = vmul.f32 %v574, %v643
    %v645 = vsub.f32 1.0, %v644
    %v646 = vmul.f32 %v643, %v645
    %v647 = vadd.f32 %v643, %v646
    %vm648 = vweird.f32 %v574
    %vm649 = vweird.f32 %v643
    %vm650 = vmor %vm648, %vm649
    %v651 = vsel %vm650, %v643, %v647
    %v652 = vand.u32 2147483647, %v574
    %vm653 = vcmp.eq.f32.partialorder %v652, 8.507059e+37
    %v654 = vand.u32 %v574, 2147483648
    %v655 = vor.u32 1.1754944e-38, %v654
    %v656 = vsel %vm653, %v655, %v651
    %v657 = vmul.f32 %v600, %v642
    %v658 = vmul.f32 %v627, %v656
    %661 = vrot.lane.b32.xlu0 %v657, 64
    %v662 = vpop.permute.xlu0 %661
    %663 = vrot.lane.b32.xlu0 %v658, 64
    %v664 = vpop.permute.xlu0 %663
    %vm667 = vcmask 1048064
    %668 = vst.msk [vmem:[#allocation2] sm:$0xff] %vm667, %v662
    %669 = vst.msk [vmem:[#allocation2 + $0x20] sm:$0xff] %vm667, %v664
    %v671 = vsel %vm351, %v116, 0
    %v674 = vsel %vm351, %v208, 0
    %676 = vmatpush.xpose.msra.mxu0 0.0
    %677 = vmatpush.xpose.msra.mxu0 0.0
    %678 = vmatpush.xpose.msra.mxu0 0.0
    %679 = vmatpush.xpose.msra.mxu0 0.0
    %680 = vmatpush.xpose.msra.mxu0 0.0
    %681 = vmatpush.xpose.msra.mxu0 0.0
    %682 = vmatpush.xpose.msra.mxu0 0.0
    %683 = vmatpush.xpose.msra.mxu0 0.0
    %684 = vmatpush.xpose.msra.mxu0 0.0
    %685 = vmatpush.xpose.msra.mxu0 0.0
    %686 = vmatpush.xpose.msra.mxu0 0.0
    %687 = vmatpush.xpose.msra.mxu0 0.0
    %688 = vmatpush.xpose.msra.mxu0 0.0
    %689 = vmatpush.xpose.msra.mxu0 0.0
    %690 = vmatpush.xpose.msra.mxu0 0.0
    %691 = vmatpush.xpose.msra.mxu0 %v674
    %692 = vmatmul.f32.gmra.mxu0 %v671
    %v693 = vpop.f32.mrf.mxu0
    %v694 = vadd.f32 0.0, %v693
    %695 = vdwg.mxu0
    %v697 = vsel %vm351, %v119, 0
    %v700 = vsel %vm351, %v211, 0
    %702 = vmatpush.xpose.msra.mxu0 0.0
    %703 = vmatpush.xpose.msra.mxu0 0.0
    %704 = vmatpush.xpose.msra.mxu0 0.0
    %705 = vmatpush.xpose.msra.mxu0 0.0
    %706 = vmatpush.xpose.msra.mxu0 0.0
    %707 = vmatpush.xpose.msra.mxu0 0.0
    %708 = vmatpush.xpose.msra.mxu0 0.0
    %709 = vmatpush.xpose.msra.mxu0 0.0
    %710 = vmatpush.xpose.msra.mxu0 0.0
    %711 = vmatpush.xpose.msra.mxu0 0.0
    %712 = vmatpush.xpose.msra.mxu0 0.0
    %713 = vmatpush.xpose.msra.mxu0 0.0
    %714 = vmatpush.xpose.msra.mxu0 0.0
    %715 = vmatpush.xpose.msra.mxu0 0.0
    %716 = vmatpush.xpose.msra.mxu0 0.0
    %717 = vmatpush.xpose.msra.mxu0 %v700
    %718 = vmatmul.f32.gmra.mxu0 %v697
    %v719 = vpop.f32.mrf.mxu0
    %v720 = vadd.f32 0.0, %v719
    %721 = vdwg.mxu0
    %v722 = vsel %vm404, %v694, -inf
    %723 = vmax.xlane.f32.xlu0 %v722
    %v724 = vpop.xlane.xlu0 %723
    %v725 = vsel %vm404, %v720, -inf
    %726 = vmax.xlane.f32.xlu0 %v725
    %v727 = vpop.xlane.xlu0 %726
    %v728 = vsub.f32 %v694, %v724
    %v729 = vsub.f32 %v720, %v727
    %v730 = vmul.f32 %v728, 1.442695
    %v731 = vpow.pop %v730
    %v732 = vmul.f32 %v729, 1.442695
    %v733 = vpow.pop %v732
    %v734 = vsel %vm404, %v731, 0.0
    %735 = vadd.xlane.f32.xlu0 %v734
    %v736 = vpop.xlane.xlu0 %735
    %v737 = vsel %vm404, %v733, 0.0
    %738 = vadd.xlane.f32.xlu0 %v737
    %v739 = vpop.xlane.xlu0 %738
    %v741 = vsel %vm404, %v731, 0
    %743 = vmatpush.msra.mxu0 0.0
    %744 = vmatpush.msra.mxu0 0.0
    %745 = vmatpush.msra.mxu0 0.0
    %746 = vmatpush.msra.mxu0 0.0
    %747 = vmatpush.msra.mxu0 0.0
    %748 = vmatpush.msra.mxu0 0.0
    %749 = vmatpush.msra.mxu0 0.0
    %750 = vmatpush.msra.mxu0 0.0
    %751 = vmatpush.msra.mxu0 0.0
    %752 = vmatpush.msra.mxu0 0.0
    %753 = vmatpush.msra.mxu0 0.0
    %754 = vmatpush.msra.mxu0 0.0
    %755 = vmatpush.msra.mxu0 0.0
    %756 = vmatpush.msra.mxu0 0.0
    %757 = vmatpush.msra.mxu0 0.0
    %758 = vmatpush.msra.mxu0 %v300
    %759 = vmatmul.f32.gmra.mxu0 %v741
    %v760 = vpop.f32.mrf.mxu0
    %v761 = vadd.f32 0.0, %v760
    %762 = vdwg.mxu0
    %v764 = vsel %vm404, %v733, 0
    %766 = vmatpush.msra.mxu0 0.0
    %767 = vmatpush.msra.mxu0 0.0
    %768 = vmatpush.msra.mxu0 0.0
    %769 = vmatpush.msra.mxu0 0.0
    %770 = vmatpush.msra.mxu0 0.0
    %771 = vmatpush.msra.mxu0 0.0
    %772 = vmatpush.msra.mxu0 0.0
    %773 = vmatpush.msra.mxu0 0.0
    %774 = vmatpush.msra.mxu0 0.0
    %775 = vmatpush.msra.mxu0 0.0
    %776 = vmatpush.msra.mxu0 0.0
    %777 = vmatpush.msra.mxu0 0.0
    %778 = vmatpush.msra.mxu0 0.0
    %779 = vmatpush.msra.mxu0 0.0
    %780 = vmatpush.msra.mxu0 0.0
    %781 = vmatpush.msra.mxu0 %v303
    %782 = vmatmul.f32.gmra.mxu0 %v764
    %v783 = vpop.f32.mrf.mxu0
    %v784 = vadd.f32 0.0, %v783
    %785 = vdwg.mxu0
    %v786 = vrcp.pop %v736
    %v787 = vmul.f32 %v736, %v786
    %v788 = vsub.f32 1.0, %v787
    %v789 = vmul.f32 %v786, %v788
    %v790 = vadd.f32 %v786, %v789
    %vm791 = vweird.f32 %v736
    %vm792 = vweird.f32 %v786
    %vm793 = vmor %vm791, %vm792
    %v794 = vsel %vm793, %v786, %v790
    %v795 = vand.u32 2147483647, %v736
    %vm796 = vcmp.eq.f32.partialorder %v795, 8.507059e+37
    %v797 = vand.u32 %v736, 2147483648
    %v798 = vor.u32 1.1754944e-38, %v797
    %v799 = vsel %vm796, %v798, %v794
    %v800 = vrcp.pop %v739
    %v801 = vmul.f32 %v739, %v800
    %v802 = vsub.f32 1.0, %v801
    %v803 = vmul.f32 %v800, %v802
    %v804 = vadd.f32 %v800, %v803
    %vm805 = vweird.f32 %v739
    %vm806 = vweird.f32 %v800
    %vm807 = vmor %vm805, %vm806
    %v808 = vsel %vm807, %v800, %v804
    %v809 = vand.u32 2147483647, %v739
    %vm810 = vcmp.eq.f32.partialorder %v809, 8.507059e+37
    %v811 = vand.u32 %v739, 2147483648
    %v812 = vor.u32 1.1754944e-38, %v811
    %v813 = vsel %vm810, %v812, %v808
    %v814 = vmul.f32 %v761, %v799
    %v815 = vmul.f32 %v784, %v813
    %816 = vst.msk [vmem:[#allocation2 + $0x8] sm:$0xff] %vm351, %v814
    %817 = vst.msk [vmem:[#allocation2 + $0x28] sm:$0xff] %vm351, %v815
    %818 = vrot.lane.b32.xlu0 %v116, 64
    %v819 = vpop.permute.xlu0 %818
    %820 = vrot.lane.b32.xlu0 %v208, 64
    %v821 = vpop.permute.xlu0 %820
    %v822 = vsel %vm351, %v819, 0
    %v824 = vsel %vm351, %v821, 0
    %826 = vmatpush.xpose.msra.mxu0 0.0
    %827 = vmatpush.xpose.msra.mxu0 0.0
    %828 = vmatpush.xpose.msra.mxu0 0.0
    %829 = vmatpush.xpose.msra.mxu0 0.0
    %830 = vmatpush.xpose.msra.mxu0 0.0
    %831 = vmatpush.xpose.msra.mxu0 0.0
    %832 = vmatpush.xpose.msra.mxu0 0.0
    %833 = vmatpush.xpose.msra.mxu0 0.0
    %834 = vmatpush.xpose.msra.mxu0 0.0
    %835 = vmatpush.xpose.msra.mxu0 0.0
    %836 = vmatpush.xpose.msra.mxu0 0.0
    %837 = vmatpush.xpose.msra.mxu0 0.0
    %838 = vmatpush.xpose.msra.mxu0 0.0
    %839 = vmatpush.xpose.msra.mxu0 0.0
    %840 = vmatpush.xpose.msra.mxu0 0.0
    %841 = vmatpush.xpose.msra.mxu0 %v824
    %842 = vmatmul.f32.gmra.mxu0 %v822
    %v843 = vpop.f32.mrf.mxu0
    %v844 = vadd.f32 0.0, %v843
    %845 = vdwg.mxu0
    %846 = vrot.lane.b32.xlu0 %v119, 64
    %v847 = vpop.permute.xlu0 %846
    %848 = vrot.lane.b32.xlu0 %v211, 64
    %v849 = vpop.permute.xlu0 %848
    %v850 = vsel %vm351, %v847, 0
    %v852 = vsel %vm351, %v849, 0
    %854 = vmatpush.xpose.msra.mxu0 0.0
    %855 = vmatpush.xpose.msra.mxu0 0.0
    %856 = vmatpush.xpose.msra.mxu0 0.0
    %857 = vmatpush.xpose.msra.mxu0 0.0
    %858 = vmatpush.xpose.msra.mxu0 0.0
    %859 = vmatpush.xpose.msra.mxu0 0.0
    %860 = vmatpush.xpose.msra.mxu0 0.0
    %861 = vmatpush.xpose.msra.mxu0 0.0
    %862 = vmatpush.xpose.msra.mxu0 0.0
    %863 = vmatpush.xpose.msra.mxu0 0.0
    %864 = vmatpush.xpose.msra.mxu0 0.0
    %865 = vmatpush.xpose.msra.mxu0 0.0
    %866 = vmatpush.xpose.msra.mxu0 0.0
    %867 = vmatpush.xpose.msra.mxu0 0.0
    %868 = vmatpush.xpose.msra.mxu0 0.0
    %869 = vmatpush.xpose.msra.mxu0 %v852
    %870 = vmatmul.f32.gmra.mxu0 %v850
    %v871 = vpop.f32.mrf.mxu0
    %v872 = vadd.f32 0.0, %v871
    %873 = vdwg.mxu0
    %v874 = vsel %vm404, %v844, -inf
    %875 = vmax.xlane.f32.xlu0 %v874
    %v876 = vpop.xlane.xlu0 %875
    %v877 = vsel %vm404, %v872, -inf
    %878 = vmax.xlane.f32.xlu0 %v877
    %v879 = vpop.xlane.xlu0 %878
    %v880 = vsub.f32 %v844, %v876
    %v881 = vsub.f32 %v872, %v879
    %v882 = vmul.f32 %v880, 1.442695
    %v883 = vpow.pop %v882
    %v884 = vmul.f32 %v881, 1.442695
    %v885 = vpow.pop %v884
    %v886 = vsel %vm404, %v883, 0.0
    %887 = vadd.xlane.f32.xlu0 %v886
    %v888 = vpop.xlane.xlu0 %887
    %v889 = vsel %vm404, %v885, 0.0
    %890 = vadd.xlane.f32.xlu0 %v889
    %v891 = vpop.xlane.xlu0 %890
    %893 = vrot.lane.b32.xlu0 %v300, 64
    %v894 = vpop.permute.xlu0 %893
    %v897 = vsel %vm404, %v883, 0
    %899 = vmatpush.msra.mxu0 0.0
    %900 = vmatpush.msra.mxu0 0.0
    %901 = vmatpush.msra.mxu0 0.0
    %902 = vmatpush.msra.mxu0 0.0
    %903 = vmatpush.msra.mxu0 0.0
    %904 = vmatpush.msra.mxu0 0.0
    %905 = vmatpush.msra.mxu0 0.0
    %906 = vmatpush.msra.mxu0 0.0
    %907 = vmatpush.msra.mxu0 0.0
    %908 = vmatpush.msra.mxu0 0.0
    %909 = vmatpush.msra.mxu0 0.0
    %910 = vmatpush.msra.mxu0 0.0
    %911 = vmatpush.msra.mxu0 0.0
    %912 = vmatpush.msra.mxu0 0.0
    %913 = vmatpush.msra.mxu0 0.0
    %914 = vmatpush.msra.mxu0 %v894
    %915 = vmatmul.f32.gmra.mxu0 %v897
    %v916 = vpop.f32.mrf.mxu0
    %v917 = vadd.f32 0.0, %v916
    %918 = vdwg.mxu0
    %920 = vrot.lane.b32.xlu0 %v303, 64
    %v921 = vpop.permute.xlu0 %920
    %v924 = vsel %vm404, %v885, 0
    %926 = vmatpush.msra.mxu0 0.0
    %927 = vmatpush.msra.mxu0 0.0
    %928 = vmatpush.msra.mxu0 0.0
    %929 = vmatpush.msra.mxu0 0.0
    %930 = vmatpush.msra.mxu0 0.0
    %931 = vmatpush.msra.mxu0 0.0
    %932 = vmatpush.msra.mxu0 0.0
    %933 = vmatpush.msra.mxu0 0.0
    %934 = vmatpush.msra.mxu0 0.0
    %935 = vmatpush.msra.mxu0 0.0
    %936 = vmatpush.msra.mxu0 0.0
    %937 = vmatpush.msra.mxu0 0.0
    %938 = vmatpush.msra.mxu0 0.0
    %939 = vmatpush.msra.mxu0 0.0
    %940 = vmatpush.msra.mxu0 0.0
    %941 = vmatpush.msra.mxu0 %v921
    %942 = vmatmul.f32.gmra.mxu0 %v924
    %v943 = vpop.f32.mrf.mxu0
    %v944 = vadd.f32 0.0, %v943
    %945 = vdwg.mxu0
    %v946 = vrcp.pop %v888
    %v947 = vmul.f32 %v888, %v946
    %v948 = vsub.f32 1.0, %v947
    %v949 = vmul.f32 %v946, %v948
    %v950 = vadd.f32 %v946, %v949
    %vm951 = vweird.f32 %v888
    %vm952 = vweird.f32 %v946
    %vm953 = vmor %vm951, %vm952
    %v954 = vsel %vm953, %v946, %v950
    %v955 = vand.u32 2147483647, %v888
    %vm956 = vcmp.eq.f32.partialorder %v955, 8.507059e+37
    %v957 = vand.u32 %v888, 2147483648
    %v958 = vor.u32 1.1754944e-38, %v957
    %v959 = vsel %vm956, %v958, %v954
    %v960 = vrcp.pop %v891
    %v961 = vmul.f32 %v891, %v960
    %v962 = vsub.f32 1.0, %v961
    %v963 = vmul.f32 %v960, %v962
    %v964 = vadd.f32 %v960, %v963
    %vm965 = vweird.f32 %v891
    %vm966 = vweird.f32 %v960
    %vm967 = vmor %vm965, %vm966
    %v968 = vsel %vm967, %v960, %v964
    %v969 = vand.u32 2147483647, %v891
    %vm970 = vcmp.eq.f32.partialorder %v969, 8.507059e+37
    %v971 = vand.u32 %v891, 2147483648
    %v972 = vor.u32 1.1754944e-38, %v971
    %v973 = vsel %vm970, %v972, %v968
    %v974 = vmul.f32 %v917, %v959
    %v975 = vmul.f32 %v944, %v973
    %978 = vrot.lane.b32.xlu0 %v974, 64
    %v979 = vpop.permute.xlu0 %978
    %980 = vrot.lane.b32.xlu0 %v975, 64
    %v981 = vpop.permute.xlu0 %980
    %984 = vst.msk [vmem:[#allocation2 + $0x8] sm:$0xff] %vm667, %v979
    %985 = vst.msk [vmem:[#allocation2 + $0x28] sm:$0xff] %vm667, %v981
    %v987 = vsel %vm351, %v139, 0
    %v990 = vsel %vm351, %v231, 0
    %992 = vmatpush.xpose.msra.mxu0 0.0
    %993 = vmatpush.xpose.msra.mxu0 0.0
    %994 = vmatpush.xpose.msra.mxu0 0.0
    %995 = vmatpush.xpose.msra.mxu0 0.0
    %996 = vmatpush.xpose.msra.mxu0 0.0
    %997 = vmatpush.xpose.msra.mxu0 0.0
    %998 = vmatpush.xpose.msra.mxu0 0.0
    %999 = vmatpush.xpose.msra.mxu0 0.0
    %1000 = vmatpush.xpose.msra.mxu0 0.0
    %1001 = vmatpush.xpose.msra.mxu0 0.0
    %1002 = vmatpush.xpose.msra.mxu0 0.0
    %1003 = vmatpush.xpose.msra.mxu0 0.0
    %1004 = vmatpush.xpose.msra.mxu0 0.0
    %1005 = vmatpush.xpose.msra.mxu0 0.0
    %1006 = vmatpush.xpose.msra.mxu0 0.0
    %1007 = vmatpush.xpose.msra.mxu0 %v990
    %1008 = vmatmul.f32.gmra.mxu0 %v987
    %v1009 = vpop.f32.mrf.mxu0
    %v1010 = vadd.f32 0.0, %v1009
    %1011 = vdwg.mxu0
    %v1013 = vsel %vm351, %v142, 0
    %v1016 = vsel %vm351, %v234, 0
    %1018 = vmatpush.xpose.msra.mxu0 0.0
    %1019 = vmatpush.xpose.msra.mxu0 0.0
    %1020 = vmatpush.xpose.msra.mxu0 0.0
    %1021 = vmatpush.xpose.msra.mxu0 0.0
    %1022 = vmatpush.xpose.msra.mxu0 0.0
    %1023 = vmatpush.xpose.msra.mxu0 0.0
    %1024 = vmatpush.xpose.msra.mxu0 0.0
    %1025 = vmatpush.xpose.msra.mxu0 0.0
    %1026 = vmatpush.xpose.msra.mxu0 0.0
    %1027 = vmatpush.xpose.msra.mxu0 0.0
    %1028 = vmatpush.xpose.msra.mxu0 0.0
    %1029 = vmatpush.xpose.msra.mxu0 0.0
    %1030 = vmatpush.xpose.msra.mxu0 0.0
    %1031 = vmatpush.xpose.msra.mxu0 0.0
    %1032 = vmatpush.xpose.msra.mxu0 0.0
    %1033 = vmatpush.xpose.msra.mxu0 %v1016
    %1034 = vmatmul.f32.gmra.mxu0 %v1013
    %v1035 = vpop.f32.mrf.mxu0
    %v1036 = vadd.f32 0.0, %v1035
    %1037 = vdwg.mxu0
    %v1038 = vsel %vm404, %v1010, -inf
    %1039 = vmax.xlane.f32.xlu0 %v1038
    %v1040 = vpop.xlane.xlu0 %1039
    %v1041 = vsel %vm404, %v1036, -inf
    %1042 = vmax.xlane.f32.xlu0 %v1041
    %v1043 = vpop.xlane.xlu0 %1042
    %v1044 = vsub.f32 %v1010, %v1040
    %v1045 = vsub.f32 %v1036, %v1043
    %v1046 = vmul.f32 %v1044, 1.442695
    %v1047 = vpow.pop %v1046
    %v1048 = vmul.f32 %v1045, 1.442695
    %v1049 = vpow.pop %v1048
    %v1050 = vsel %vm404, %v1047, 0.0
    %1051 = vadd.xlane.f32.xlu0 %v1050
    %v1052 = vpop.xlane.xlu0 %1051
    %v1053 = vsel %vm404, %v1049, 0.0
    %1054 = vadd.xlane.f32.xlu0 %v1053
    %v1055 = vpop.xlane.xlu0 %1054
    %v1057 = vsel %vm404, %v1047, 0
    %1059 = vmatpush.msra.mxu0 0.0
    %1060 = vmatpush.msra.mxu0 0.0
    %1061 = vmatpush.msra.mxu0 0.0
    %1062 = vmatpush.msra.mxu0 0.0
    %1063 = vmatpush.msra.mxu0 0.0
    %1064 = vmatpush.msra.mxu0 0.0
    %1065 = vmatpush.msra.mxu0 0.0
    %1066 = vmatpush.msra.mxu0 0.0
    %1067 = vmatpush.msra.mxu0 0.0
    %1068 = vmatpush.msra.mxu0 0.0
    %1069 = vmatpush.msra.mxu0 0.0
    %1070 = vmatpush.msra.mxu0 0.0
    %1071 = vmatpush.msra.mxu0 0.0
    %1072 = vmatpush.msra.mxu0 0.0
    %1073 = vmatpush.msra.mxu0 0.0
    %1074 = vmatpush.msra.mxu0 %v323
    %1075 = vmatmul.f32.gmra.mxu0 %v1057
    %v1076 = vpop.f32.mrf.mxu0
    %v1077 = vadd.f32 0.0, %v1076
    %1078 = vdwg.mxu0
    %v1080 = vsel %vm404, %v1049, 0
    %1082 = vmatpush.msra.mxu0 0.0
    %1083 = vmatpush.msra.mxu0 0.0
    %1084 = vmatpush.msra.mxu0 0.0
    %1085 = vmatpush.msra.mxu0 0.0
    %1086 = vmatpush.msra.mxu0 0.0
    %1087 = vmatpush.msra.mxu0 0.0
    %1088 = vmatpush.msra.mxu0 0.0
    %1089 = vmatpush.msra.mxu0 0.0
    %1090 = vmatpush.msra.mxu0 0.0
    %1091 = vmatpush.msra.mxu0 0.0
    %1092 = vmatpush.msra.mxu0 0.0
    %1093 = vmatpush.msra.mxu0 0.0
    %1094 = vmatpush.msra.mxu0 0.0
    %1095 = vmatpush.msra.mxu0 0.0
    %1096 = vmatpush.msra.mxu0 0.0
    %1097 = vmatpush.msra.mxu0 %v326
    %1098 = vmatmul.f32.gmra.mxu0 %v1080
    %v1099 = vpop.f32.mrf.mxu0
    %v1100 = vadd.f32 0.0, %v1099
    %1101 = vdwg.mxu0
    %v1102 = vrcp.pop %v1052
    %v1103 = vmul.f32 %v1052, %v1102
    %v1104 = vsub.f32 1.0, %v1103
    %v1105 = vmul.f32 %v1102, %v1104
    %v1106 = vadd.f32 %v1102, %v1105
    %vm1107 = vweird.f32 %v1052
    %vm1108 = vweird.f32 %v1102
    %vm1109 = vmor %vm1107, %vm1108
    %v1110 = vsel %vm1109, %v1102, %v1106
    %v1111 = vand.u32 2147483647, %v1052
    %vm1112 = vcmp.eq.f32.partialorder %v1111, 8.507059e+37
    %v1113 = vand.u32 %v1052, 2147483648
    %v1114 = vor.u32 1.1754944e-38, %v1113
    %v1115 = vsel %vm1112, %v1114, %v1110
    %v1116 = vrcp.pop %v1055
    %v1117 = vmul.f32 %v1055, %v1116
    %v1118 = vsub.f32 1.0, %v1117
    %v1119 = vmul.f32 %v1116, %v1118
    %v1120 = vadd.f32 %v1116, %v1119
    %vm1121 = vweird.f32 %v1055
    %vm1122 = vweird.f32 %v1116
    %vm1123 = vmor %vm1121, %vm1122
    %v1124 = vsel %vm1123, %v1116, %v1120
    %v1125 = vand.u32 2147483647, %v1055
    %vm1126 = vcmp.eq.f32.partialorder %v1125, 8.507059e+37
    %v1127 = vand.u32 %v1055, 2147483648
    %v1128 = vor.u32 1.1754944e-38, %v1127
    %v1129 = vsel %vm1126, %v1128, %v1124
    %v1130 = vmul.f32 %v1077, %v1115
    %v1131 = vmul.f32 %v1100, %v1129
    %1132 = vst.msk [vmem:[#allocation2 + $0x10] sm:$0xff] %vm351, %v1130
    %1133 = vst.msk [vmem:[#allocation2 + $0x30] sm:$0xff] %vm351, %v1131
    %1134 = vrot.lane.b32.xlu0 %v139, 64
    %v1135 = vpop.permute.xlu0 %1134
    %1136 = vrot.lane.b32.xlu0 %v231, 64
    %v1137 = vpop.permute.xlu0 %1136
    %v1138 = vsel %vm351, %v1135, 0
    %v1140 = vsel %vm351, %v1137, 0
    %1142 = vmatpush.xpose.msra.mxu0 0.0
    %1143 = vmatpush.xpose.msra.mxu0 0.0
    %1144 = vmatpush.xpose.msra.mxu0 0.0
    %1145 = vmatpush.xpose.msra.mxu0 0.0
    %1146 = vmatpush.xpose.msra.mxu0 0.0
    %1147 = vmatpush.xpose.msra.mxu0 0.0
    %1148 = vmatpush.xpose.msra.mxu0 0.0
    %1149 = vmatpush.xpose.msra.mxu0 0.0
    %1150 = vmatpush.xpose.msra.mxu0 0.0
    %1151 = vmatpush.xpose.msra.mxu0 0.0
    %1152 = vmatpush.xpose.msra.mxu0 0.0
    %1153 = vmatpush.xpose.msra.mxu0 0.0
    %1154 = vmatpush.xpose.msra.mxu0 0.0
    %1155 = vmatpush.xpose.msra.mxu0 0.0
    %1156 = vmatpush.xpose.msra.mxu0 0.0
    %1157 = vmatpush.xpose.msra.mxu0 %v1140
    %1158 = vmatmul.f32.gmra.mxu0 %v1138
    %v1159 = vpop.f32.mrf.mxu0
    %v1160 = vadd.f32 0.0, %v1159
    %1161 = vdwg.mxu0
    %1162 = vrot.lane.b32.xlu0 %v142, 64
    %v1163 = vpop.permute.xlu0 %1162
    %1164 = vrot.lane.b32.xlu0 %v234, 64
    %v1165 = vpop.permute.xlu0 %1164
    %v1166 = vsel %vm351, %v1163, 0
    %v1168 = vsel %vm351, %v1165, 0
    %1170 = vmatpush.xpose.msra.mxu0 0.0
    %1171 = vmatpush.xpose.msra.mxu0 0.0
    %1172 = vmatpush.xpose.msra.mxu0 0.0
    %1173 = vmatpush.xpose.msra.mxu0 0.0
    %1174 = vmatpush.xpose.msra.mxu0 0.0
    %1175 = vmatpush.xpose.msra.mxu0 0.0
    %1176 = vmatpush.xpose.msra.mxu0 0.0
    %1177 = vmatpush.xpose.msra.mxu0 0.0
    %1178 = vmatpush.xpose.msra.mxu0 0.0
    %1179 = vmatpush.xpose.msra.mxu0 0.0
    %1180 = vmatpush.xpose.msra.mxu0 0.0
    %1181 = vmatpush.xpose.msra.mxu0 0.0
    %1182 = vmatpush.xpose.msra.mxu0 0.0
    %1183 = vmatpush.xpose.msra.mxu0 0.0
    %1184 = vmatpush.xpose.msra.mxu0 0.0
    %1185 = vmatpush.xpose.msra.mxu0 %v1168
    %1186 = vmatmul.f32.gmra.mxu0 %v1166
    %v1187 = vpop.f32.mrf.mxu0
    %v1188 = vadd.f32 0.0, %v1187
    %1189 = vdwg.mxu0
    %v1190 = vsel %vm404, %v1160, -inf
    %1191 = vmax.xlane.f32.xlu0 %v1190
    %v1192 = vpop.xlane.xlu0 %1191
    %v1193 = vsel %vm404, %v1188, -inf
    %1194 = vmax.xlane.f32.xlu0 %v1193
    %v1195 = vpop.xlane.xlu0 %1194
    %v1196 = vsub.f32 %v1160, %v1192
    %v1197 = vsub.f32 %v1188, %v1195
    %v1198 = vmul.f32 %v1196, 1.442695
    %v1199 = vpow.pop %v1198
    %v1200 = vmul.f32 %v1197, 1.442695
    %v1201 = vpow.pop %v1200
    %v1202 = vsel %vm404, %v1199, 0.0
    %1203 = vadd.xlane.f32.xlu0 %v1202
    %v1204 = vpop.xlane.xlu0 %1203
    %v1205 = vsel %vm404, %v1201, 0.0
    %1206 = vadd.xlane.f32.xlu0 %v1205
    %v1207 = vpop.xlane.xlu0 %1206
    %1209 = vrot.lane.b32.xlu0 %v323, 64
    %v1210 = vpop.permute.xlu0 %1209
    %v1213 = vsel %vm404, %v1199, 0
    %1215 = vmatpush.msra.mxu0 0.0
    %1216 = vmatpush.msra.mxu0 0.0
    %1217 = vmatpush.msra.mxu0 0.0
    %1218 = vmatpush.msra.mxu0 0.0
    %1219 = vmatpush.msra.mxu0 0.0
    %1220 = vmatpush.msra.mxu0 0.0
    %1221 = vmatpush.msra.mxu0 0.0
    %1222 = vmatpush.msra.mxu0 0.0
    %1223 = vmatpush.msra.mxu0 0.0
    %1224 = vmatpush.msra.mxu0 0.0
    %1225 = vmatpush.msra.mxu0 0.0
    %1226 = vmatpush.msra.mxu0 0.0
    %1227 = vmatpush.msra.mxu0 0.0
    %1228 = vmatpush.msra.mxu0 0.0
    %1229 = vmatpush.msra.mxu0 0.0
    %1230 = vmatpush.msra.mxu0 %v1210
    %1231 = vmatmul.f32.gmra.mxu0 %v1213
    %v1232 = vpop.f32.mrf.mxu0
    %v1233 = vadd.f32 0.0, %v1232
    %1234 = vdwg.mxu0
    %1236 = vrot.lane.b32.xlu0 %v326, 64
    %v1237 = vpop.permute.xlu0 %1236
    %v1240 = vsel %vm404, %v1201, 0
    %1242 = vmatpush.msra.mxu0 0.0
    %1243 = vmatpush.msra.mxu0 0.0
    %1244 = vmatpush.msra.mxu0 0.0
    %1245 = vmatpush.msra.mxu0 0.0
    %1246 = vmatpush.msra.mxu0 0.0
    %1247 = vmatpush.msra.mxu0 0.0
    %1248 = vmatpush.msra.mxu0 0.0
    %1249 = vmatpush.msra.mxu0 0.0
    %1250 = vmatpush.msra.mxu0 0.0
    %1251 = vmatpush.msra.mxu0 0.0
    %1252 = vmatpush.msra.mxu0 0.0
    %1253 = vmatpush.msra.mxu0 0.0
    %1254 = vmatpush.msra.mxu0 0.0
    %1255 = vmatpush.msra.mxu0 0.0
    %1256 = vmatpush.msra.mxu0 0.0
    %1257 = vmatpush.msra.mxu0 %v1237
    %1258 = vmatmul.f32.gmra.mxu0 %v1240
    %v1259 = vpop.f32.mrf.mxu0
    %v1260 = vadd.f32 0.0, %v1259
    %1261 = vdwg.mxu0
    %v1262 = vrcp.pop %v1204
    %v1263 = vmul.f32 %v1204, %v1262
    %v1264 = vsub.f32 1.0, %v1263
    %v1265 = vmul.f32 %v1262, %v1264
    %v1266 = vadd.f32 %v1262, %v1265
    %vm1267 = vweird.f32 %v1204
    %vm1268 = vweird.f32 %v1262
    %vm1269 = vmor %vm1267, %vm1268
    %v1270 = vsel %vm1269, %v1262, %v1266
    %v1271 = vand.u32 2147483647, %v1204
    %vm1272 = vcmp.eq.f32.partialorder %v1271, 8.507059e+37
    %v1273 = vand.u32 %v1204, 2147483648
    %v1274 = vor.u32 1.1754944e-38, %v1273
    %v1275 = vsel %vm1272, %v1274, %v1270
    %v1276 = vrcp.pop %v1207
    %v1277 = vmul.f32 %v1207, %v1276
    %v1278 = vsub.f32 1.0, %v1277
    %v1279 = vmul.f32 %v1276, %v1278
    %v1280 = vadd.f32 %v1276, %v1279
    %vm1281 = vweird.f32 %v1207
    %vm1282 = vweird.f32 %v1276
    %vm1283 = vmor %vm1281, %vm1282
    %v1284 = vsel %vm1283, %v1276, %v1280
    %v1285 = vand.u32 2147483647, %v1207
    %vm1286 = vcmp.eq.f32.partialorder %v1285, 8.507059e+37
    %v1287 = vand.u32 %v1207, 2147483648
    %v1288 = vor.u32 1.1754944e-38, %v1287
    %v1289 = vsel %vm1286, %v1288, %v1284
    %v1290 = vmul.f32 %v1233, %v1275
    %v1291 = vmul.f32 %v1260, %v1289
    %1294 = vrot.lane.b32.xlu0 %v1290, 64
    %v1295 = vpop.permute.xlu0 %1294
    %1296 = vrot.lane.b32.xlu0 %v1291, 64
    %v1297 = vpop.permute.xlu0 %1296
    %1300 = vst.msk [vmem:[#allocation2 + $0x10] sm:$0xff] %vm667, %v1295
    %1301 = vst.msk [vmem:[#allocation2 + $0x30] sm:$0xff] %vm667, %v1297
    %v1303 = vsel %vm351, %v162, 0
    %v1306 = vsel %vm351, %v254, 0
    %1308 = vmatpush.xpose.msra.mxu0 0.0
    %1309 = vmatpush.xpose.msra.mxu0 0.0
    %1310 = vmatpush.xpose.msra.mxu0 0.0
    %1311 = vmatpush.xpose.msra.mxu0 0.0
    %1312 = vmatpush.xpose.msra.mxu0 0.0
    %1313 = vmatpush.xpose.msra.mxu0 0.0
    %1314 = vmatpush.xpose.msra.mxu0 0.0
    %1315 = vmatpush.xpose.msra.mxu0 0.0
    %1316 = vmatpush.xpose.msra.mxu0 0.0
    %1317 = vmatpush.xpose.msra.mxu0 0.0
    %1318 = vmatpush.xpose.msra.mxu0 0.0
    %1319 = vmatpush.xpose.msra.mxu0 0.0
    %1320 = vmatpush.xpose.msra.mxu0 0.0
    %1321 = vmatpush.xpose.msra.mxu0 0.0
    %1322 = vmatpush.xpose.msra.mxu0 0.0
    %1323 = vmatpush.xpose.msra.mxu0 %v1306
    %1324 = vmatmul.f32.gmra.mxu0 %v1303
    %v1325 = vpop.f32.mrf.mxu0
    %v1326 = vadd.f32 0.0, %v1325
    %1327 = vdwg.mxu0
    %v1329 = vsel %vm351, %v165, 0
    %v1332 = vsel %vm351, %v257, 0
    %1334 = vmatpush.xpose.msra.mxu0 0.0
    %1335 = vmatpush.xpose.msra.mxu0 0.0
    %1336 = vmatpush.xpose.msra.mxu0 0.0
    %1337 = vmatpush.xpose.msra.mxu0 0.0
    %1338 = vmatpush.xpose.msra.mxu0 0.0
    %1339 = vmatpush.xpose.msra.mxu0 0.0
    %1340 = vmatpush.xpose.msra.mxu0 0.0
    %1341 = vmatpush.xpose.msra.mxu0 0.0
    %1342 = vmatpush.xpose.msra.mxu0 0.0
    %1343 = vmatpush.xpose.msra.mxu0 0.0
    %1344 = vmatpush.xpose.msra.mxu0 0.0
    %1345 = vmatpush.xpose.msra.mxu0 0.0
    %1346 = vmatpush.xpose.msra.mxu0 0.0
    %1347 = vmatpush.xpose.msra.mxu0 0.0
    %1348 = vmatpush.xpose.msra.mxu0 0.0
    %1349 = vmatpush.xpose.msra.mxu0 %v1332
    %1350 = vmatmul.f32.gmra.mxu0 %v1329
    %v1351 = vpop.f32.mrf.mxu0
    %v1352 = vadd.f32 0.0, %v1351
    %1353 = vdwg.mxu0
    %v1354 = vsel %vm404, %v1326, -inf
    %1355 = vmax.xlane.f32.xlu0 %v1354
    %v1356 = vpop.xlane.xlu0 %1355
    %v1357 = vsel %vm404, %v1352, -inf
    %1358 = vmax.xlane.f32.xlu0 %v1357
    %v1359 = vpop.xlane.xlu0 %1358
    %v1360 = vsub.f32 %v1326, %v1356
    %v1361 = vsub.f32 %v1352, %v1359
    %v1362 = vmul.f32 %v1360, 1.442695
    %v1363 = vpow.pop %v1362
    %v1364 = vmul.f32 %v1361, 1.442695
    %v1365 = vpow.pop %v1364
    %v1366 = vsel %vm404, %v1363, 0.0
    %1367 = vadd.xlane.f32.xlu0 %v1366
    %v1368 = vpop.xlane.xlu0 %1367
    %v1369 = vsel %vm404, %v1365, 0.0
    %1370 = vadd.xlane.f32.xlu0 %v1369
    %v1371 = vpop.xlane.xlu0 %1370
    %v1373 = vsel %vm404, %v1363, 0
    %1375 = vmatpush.msra.mxu0 0.0
    %1376 = vmatpush.msra.mxu0 0.0
    %1377 = vmatpush.msra.mxu0 0.0
    %1378 = vmatpush.msra.mxu0 0.0
    %1379 = vmatpush.msra.mxu0 0.0
    %1380 = vmatpush.msra.mxu0 0.0
    %1381 = vmatpush.msra.mxu0 0.0
    %1382 = vmatpush.msra.mxu0 0.0
    %1383 = vmatpush.msra.mxu0 0.0
    %1384 = vmatpush.msra.mxu0 0.0
    %1385 = vmatpush.msra.mxu0 0.0
    %1386 = vmatpush.msra.mxu0 0.0
    %1387 = vmatpush.msra.mxu0 0.0
    %1388 = vmatpush.msra.mxu0 0.0
    %1389 = vmatpush.msra.mxu0 0.0
    %1390 = vmatpush.msra.mxu0 %v346
    %1391 = vmatmul.f32.gmra.mxu0 %v1373
    %v1392 = vpop.f32.mrf.mxu0
    %v1393 = vadd.f32 0.0, %v1392
    %1394 = vdwg.mxu0
    %v1396 = vsel %vm404, %v1365, 0
    %1398 = vmatpush.msra.mxu0 0.0
    %1399 = vmatpush.msra.mxu0 0.0
    %1400 = vmatpush.msra.mxu0 0.0
    %1401 = vmatpush.msra.mxu0 0.0
    %1402 = vmatpush.msra.mxu0 0.0
    %1403 = vmatpush.msra.mxu0 0.0
    %1404 = vmatpush.msra.mxu0 0.0
    %1405 = vmatpush.msra.mxu0 0.0
    %1406 = vmatpush.msra.mxu0 0.0
    %1407 = vmatpush.msra.mxu0 0.0
    %1408 = vmatpush.msra.mxu0 0.0
    %1409 = vmatpush.msra.mxu0 0.0
    %1410 = vmatpush.msra.mxu0 0.0
    %1411 = vmatpush.msra.mxu0 0.0
    %1412 = vmatpush.msra.mxu0 0.0
    %1413 = vmatpush.msra.mxu0 %v349
    %1414 = vmatmul.f32.gmra.mxu0 %v1396
    %v1415 = vpop.f32.mrf.mxu0
    %v1416 = vadd.f32 0.0, %v1415
    %1417 = vdwg.mxu0
    %v1418 = vrcp.pop %v1368
    %v1419 = vmul.f32 %v1368, %v1418
    %v1420 = vsub.f32 1.0, %v1419
    %v1421 = vmul.f32 %v1418, %v1420
    %v1422 = vadd.f32 %v1418, %v1421
    %vm1423 = vweird.f32 %v1368
    %vm1424 = vweird.f32 %v1418
    %vm1425 = vmor %vm1423, %vm1424
    %v1426 = vsel %vm1425, %v1418, %v1422
    %v1427 = vand.u32 2147483647, %v1368
    %vm1428 = vcmp.eq.f32.partialorder %v1427, 8.507059e+37
    %v1429 = vand.u32 %v1368, 2147483648
    %v1430 = vor.u32 1.1754944e-38, %v1429
    %v1431 = vsel %vm1428, %v1430, %v1426
    %v1432 = vrcp.pop %v1371
    %v1433 = vmul.f32 %v1371, %v1432
    %v1434 = vsub.f32 1.0, %v1433
    %v1435 = vmul.f32 %v1432, %v1434
    %v1436 = vadd.f32 %v1432, %v1435
    %vm1437 = vweird.f32 %v1371
    %vm1438 = vweird.f32 %v1432
    %vm1439 = vmor %vm1437, %vm1438
    %v1440 = vsel %vm1439, %v1432, %v1436
    %v1441 = vand.u32 2147483647, %v1371
    %vm1442 = vcmp.eq.f32.partialorder %v1441, 8.507059e+37
    %v1443 = vand.u32 %v1371, 2147483648
    %v1444 = vor.u32 1.1754944e-38, %v1443
    %v1445 = vsel %vm1442, %v1444, %v1440
    %v1446 = vmul.f32 %v1393, %v1431
    %v1447 = vmul.f32 %v1416, %v1445
    %1448 = vst.msk [vmem:[#allocation2 + $0x18] sm:$0xff] %vm351, %v1446
    %1449 = vst.msk [vmem:[#allocation2 + $0x38] sm:$0xff] %vm351, %v1447
    %1450 = vrot.lane.b32.xlu0 %v162, 64
    %v1451 = vpop.permute.xlu0 %1450
    %1452 = vrot.lane.b32.xlu0 %v254, 64
    %v1453 = vpop.permute.xlu0 %1452
    %v1454 = vsel %vm351, %v1451, 0
    %v1456 = vsel %vm351, %v1453, 0
    %1458 = vmatpush.xpose.msra.mxu0 0.0
    %1459 = vmatpush.xpose.msra.mxu0 0.0
    %1460 = vmatpush.xpose.msra.mxu0 0.0
    %1461 = vmatpush.xpose.msra.mxu0 0.0
    %1462 = vmatpush.xpose.msra.mxu0 0.0
    %1463 = vmatpush.xpose.msra.mxu0 0.0
    %1464 = vmatpush.xpose.msra.mxu0 0.0
    %1465 = vmatpush.xpose.msra.mxu0 0.0
    %1466 = vmatpush.xpose.msra.mxu0 0.0
    %1467 = vmatpush.xpose.msra.mxu0 0.0
    %1468 = vmatpush.xpose.msra.mxu0 0.0
    %1469 = vmatpush.xpose.msra.mxu0 0.0
    %1470 = vmatpush.xpose.msra.mxu0 0.0
    %1471 = vmatpush.xpose.msra.mxu0 0.0
    %1472 = vmatpush.xpose.msra.mxu0 0.0
    %1473 = vmatpush.xpose.msra.mxu0 %v1456
    %1474 = vmatmul.f32.gmra.mxu0 %v1454
    %v1475 = vpop.f32.mrf.mxu0
    %v1476 = vadd.f32 0.0, %v1475
    %1477 = vdwg.mxu0
    %1478 = vrot.lane.b32.xlu0 %v165, 64
    %v1479 = vpop.permute.xlu0 %1478
    %1480 = vrot.lane.b32.xlu0 %v257, 64
    %v1481 = vpop.permute.xlu0 %1480
    %v1482 = vsel %vm351, %v1479, 0
    %v1484 = vsel %vm351, %v1481, 0
    %1486 = vmatpush.xpose.msra.mxu0 0.0
    %1487 = vmatpush.xpose.msra.mxu0 0.0
    %1488 = vmatpush.xpose.msra.mxu0 0.0
    %1489 = vmatpush.xpose.msra.mxu0 0.0
    %1490 = vmatpush.xpose.msra.mxu0 0.0
    %1491 = vmatpush.xpose.msra.mxu0 0.0
    %1492 = vmatpush.xpose.msra.mxu0 0.0
    %1493 = vmatpush.xpose.msra.mxu0 0.0
    %1494 = vmatpush.xpose.msra.mxu0 0.0
    %1495 = vmatpush.xpose.msra.mxu0 0.0
    %1496 = vmatpush.xpose.msra.mxu0 0.0
    %1497 = vmatpush.xpose.msra.mxu0 0.0
    %1498 = vmatpush.xpose.msra.mxu0 0.0
    %1499 = vmatpush.xpose.msra.mxu0 0.0
    %1500 = vmatpush.xpose.msra.mxu0 0.0
    %1501 = vmatpush.xpose.msra.mxu0 %v1484
    %1502 = vmatmul.f32.gmra.mxu0 %v1482
    %v1503 = vpop.f32.mrf.mxu0
    %v1504 = vadd.f32 0.0, %v1503
    %1505 = vdwg.mxu0
    %v1506 = vsel %vm404, %v1476, -inf
    %1507 = vmax.xlane.f32.xlu0 %v1506
    %v1508 = vpop.xlane.xlu0 %1507
    %v1509 = vsel %vm404, %v1504, -inf
    %1510 = vmax.xlane.f32.xlu0 %v1509
    %v1511 = vpop.xlane.xlu0 %1510
    %v1512 = vsub.f32 %v1476, %v1508
    %v1513 = vsub.f32 %v1504, %v1511
    %v1514 = vmul.f32 %v1512, 1.442695
    %v1515 = vpow.pop %v1514
    %v1516 = vmul.f32 %v1513, 1.442695
    %v1517 = vpow.pop %v1516
    %v1518 = vsel %vm404, %v1515, 0.0
    %1519 = vadd.xlane.f32.xlu0 %v1518
    %v1520 = vpop.xlane.xlu0 %1519
    %v1521 = vsel %vm404, %v1517, 0.0
    %1522 = vadd.xlane.f32.xlu0 %v1521
    %v1523 = vpop.xlane.xlu0 %1522
    %1525 = vrot.lane.b32.xlu0 %v346, 64
    %v1526 = vpop.permute.xlu0 %1525
    %v1529 = vsel %vm404, %v1515, 0
    %1531 = vmatpush.msra.mxu0 0.0
    %1532 = vmatpush.msra.mxu0 0.0
    %1533 = vmatpush.msra.mxu0 0.0
    %1534 = vmatpush.msra.mxu0 0.0
    %1535 = vmatpush.msra.mxu0 0.0
    %1536 = vmatpush.msra.mxu0 0.0
    %1537 = vmatpush.msra.mxu0 0.0
    %1538 = vmatpush.msra.mxu0 0.0
    %1539 = vmatpush.msra.mxu0 0.0
    %1540 = vmatpush.msra.mxu0 0.0
    %1541 = vmatpush.msra.mxu0 0.0
    %1542 = vmatpush.msra.mxu0 0.0
    %1543 = vmatpush.msra.mxu0 0.0
    %1544 = vmatpush.msra.mxu0 0.0
    %1545 = vmatpush.msra.mxu0 0.0
    %1546 = vmatpush.msra.mxu0 %v1526
    %1547 = vmatmul.f32.gmra.mxu0 %v1529
    %v1548 = vpop.f32.mrf.mxu0
    %v1549 = vadd.f32 0.0, %v1548
    %1550 = vdwg.mxu0
    %1552 = vrot.lane.b32.xlu0 %v349, 64
    %v1553 = vpop.permute.xlu0 %1552
    %v1556 = vsel %vm404, %v1517, 0
    %1558 = vmatpush.msra.mxu0 0.0
    %1559 = vmatpush.msra.mxu0 0.0
    %1560 = vmatpush.msra.mxu0 0.0
    %1561 = vmatpush.msra.mxu0 0.0
    %1562 = vmatpush.msra.mxu0 0.0
    %1563 = vmatpush.msra.mxu0 0.0
    %1564 = vmatpush.msra.mxu0 0.0
    %1565 = vmatpush.msra.mxu0 0.0
    %1566 = vmatpush.msra.mxu0 0.0
    %1567 = vmatpush.msra.mxu0 0.0
    %1568 = vmatpush.msra.mxu0 0.0
    %1569 = vmatpush.msra.mxu0 0.0
    %1570 = vmatpush.msra.mxu0 0.0
    %1571 = vmatpush.msra.mxu0 0.0
    %1572 = vmatpush.msra.mxu0 0.0
    %1573 = vmatpush.msra.mxu0 %v1553
    %1574 = vmatmul.f32.gmra.mxu0 %v1556
    %v1575 = vpop.f32.mrf.mxu0
    %v1576 = vadd.f32 0.0, %v1575
    %1577 = vdwg.mxu0
    %v1578 = vrcp.pop %v1520
    %v1579 = vmul.f32 %v1520, %v1578
    %v1580 = vsub.f32 1.0, %v1579
    %v1581 = vmul.f32 %v1578, %v1580
    %v1582 = vadd.f32 %v1578, %v1581
    %vm1583 = vweird.f32 %v1520
    %vm1584 = vweird.f32 %v1578
    %vm1585 = vmor %vm1583, %vm1584
    %v1586 = vsel %vm1585, %v1578, %v1582
    %v1587 = vand.u32 2147483647, %v1520
    %vm1588 = vcmp.eq.f32.partialorder %v1587, 8.507059e+37
    %v1589 = vand.u32 %v1520, 2147483648
    %v1590 = vor.u32 1.1754944e-38, %v1589
    %v1591 = vsel %vm1588, %v1590, %v1586
    %v1592 = vrcp.pop %v1523
    %v1593 = vmul.f32 %v1523, %v1592
    %v1594 = vsub.f32 1.0, %v1593
    %v1595 = vmul.f32 %v1592, %v1594
    %v1596 = vadd.f32 %v1592, %v1595
    %vm1597 = vweird.f32 %v1523
    %vm1598 = vweird.f32 %v1592
    %vm1599 = vmor %vm1597, %vm1598
    %v1600 = vsel %vm1599, %v1592, %v1596
    %v1601 = vand.u32 2147483647, %v1523
    %vm1602 = vcmp.eq.f32.partialorder %v1601, 8.507059e+37
    %v1603 = vand.u32 %v1523, 2147483648
    %v1604 = vor.u32 1.1754944e-38, %v1603
    %v1605 = vsel %vm1602, %v1604, %v1600
    %v1606 = vmul.f32 %v1549, %v1591
    %v1607 = vmul.f32 %v1576, %v1605
    %1610 = vrot.lane.b32.xlu0 %v1606, 64
    %v1611 = vpop.permute.xlu0 %1610
    %1612 = vrot.lane.b32.xlu0 %v1607, 64
    %v1613 = vpop.permute.xlu0 %1612
    %1616 = vst.msk [vmem:[#allocation2 + $0x18] sm:$0xff] %vm667, %v1611
    %1617 = vst.msk [vmem:[#allocation2 + $0x38] sm:$0xff] %vm667, %v1613
    %v1618 = vld [vmem:[#allocation2] sm:$0xff]
    %v1619 = vld [vmem:[#allocation2 + $0x8] sm:$0xff]
    %v1620 = vld [vmem:[#allocation2 + $0x10] sm:$0xff]
    %v1621 = vld [vmem:[#allocation2 + $0x18] sm:$0xff]
    %v1622 = vld [vmem:[#allocation2 + $0x20] sm:$0xff]
    %v1623 = vld [vmem:[#allocation2 + $0x28] sm:$0xff]
    %v1624 = vld [vmem:[#allocation2 + $0x30] sm:$0xff]
    %v1625 = vld [vmem:[#allocation2 + $0x38] sm:$0xff]
    %v1626 = vld [vmem:[%s2] sm:$0xff]
    %v1627 = vld [vmem:[%s2 + $0x8] sm:$0xff]
    %v1628 = vld [vmem:[%s2 + $0x10] sm:$0xff]
    %v1629 = vld [vmem:[%s2 + $0x18] sm:$0xff]
    %v1630 = vld [vmem:[%s2 + $0x20] sm:$0xff]
    %v1631 = vld [vmem:[%s2 + $0x28] sm:$0xff]
    %v1632 = vld [vmem:[%s2 + $0x30] sm:$0xff]
    %v1633 = vld [vmem:[%s2 + $0x38] sm:$0xff]
    %v1634 = vld [vmem:[%s2 + $0x40] sm:$0xff]
    %v1635 = vld [vmem:[%s2 + $0x48] sm:$0xff]
    %v1636 = vld [vmem:[%s2 + $0x50] sm:$0xff]
    %v1637 = vld [vmem:[%s2 + $0x58] sm:$0xff]
    %v1638 = vld [vmem:[%s2 + $0x60] sm:$0xff]
    %v1639 = vld [vmem:[%s2 + $0x68] sm:$0xff]
    %v1640 = vld [vmem:[%s2 + $0x70] sm:$0xff]
    %v1641 = vld [vmem:[%s2 + $0x78] sm:$0xff]
    %v1642 = vld [vmem:[%s2 + $0x80] sm:$0xff]
    %v1643 = vld [vmem:[%s2 + $0x88] sm:$0xff]
    %v1644 = vld [vmem:[%s2 + $0x90] sm:$0xff]
    %v1645 = vld [vmem:[%s2 + $0x98] sm:$0xff]
    %v1646 = vld [vmem:[%s2 + $0xa0] sm:$0xff]
    %v1647 = vld [vmem:[%s2 + $0xa8] sm:$0xff]
    %v1648 = vld [vmem:[%s2 + $0xb0] sm:$0xff]
    %v1649 = vld [vmem:[%s2 + $0xb8] sm:$0xff]
    %v1650 = vld [vmem:[%s2 + $0xc0] sm:$0xff]
    %v1651 = vld [vmem:[%s2 + $0xc8] sm:$0xff]
    %v1652 = vld [vmem:[%s2 + $0xd0] sm:$0xff]
    %v1653 = vld [vmem:[%s2 + $0xd8] sm:$0xff]
    %v1654 = vld [vmem:[%s2 + $0xe0] sm:$0xff]
    %v1655 = vld [vmem:[%s2 + $0xe8] sm:$0xff]
    %v1656 = vld [vmem:[%s2 + $0xf0] sm:$0xff]
    %v1657 = vld [vmem:[%s2 + $0xf8] sm:$0xff]
    %v1658 = vld [vmem:[%s2 + $0x100] sm:$0xff]
    %v1659 = vld [vmem:[%s2 + $0x108] sm:$0xff]
    %v1660 = vld [vmem:[%s2 + $0x110] sm:$0xff]
    %v1661 = vld [vmem:[%s2 + $0x118] sm:$0xff]
    %v1662 = vld [vmem:[%s2 + $0x120] sm:$0xff]
    %v1663 = vld [vmem:[%s2 + $0x128] sm:$0xff]
    %v1664 = vld [vmem:[%s2 + $0x130] sm:$0xff]
    %v1665 = vld [vmem:[%s2 + $0x138] sm:$0xff]
    %v1666 = vld [vmem:[%s2 + $0x140] sm:$0xff]
    %v1667 = vld [vmem:[%s2 + $0x148] sm:$0xff]
    %v1668 = vld [vmem:[%s2 + $0x150] sm:$0xff]
    %v1669 = vld [vmem:[%s2 + $0x158] sm:$0xff]
    %v1670 = vld [vmem:[%s2 + $0x160] sm:$0xff]
    %v1671 = vld [vmem:[%s2 + $0x168] sm:$0xff]
    %v1672 = vld [vmem:[%s2 + $0x170] sm:$0xff]
    %v1673 = vld [vmem:[%s2 + $0x178] sm:$0xff]
    %v1674 = vld [vmem:[%s2 + $0x180] sm:$0xff]
    %v1675 = vld [vmem:[%s2 + $0x188] sm:$0xff]
    %v1676 = vld [vmem:[%s2 + $0x190] sm:$0xff]
    %v1677 = vld [vmem:[%s2 + $0x198] sm:$0xff]
    %v1678 = vld [vmem:[%s2 + $0x1a0] sm:$0xff]
    %v1679 = vld [vmem:[%s2 + $0x1a8] sm:$0xff]
    %v1680 = vld [vmem:[%s2 + $0x1b0] sm:$0xff]
    %v1681 = vld [vmem:[%s2 + $0x1b8] sm:$0xff]
    %v1682 = vld [vmem:[%s2 + $0x1c0] sm:$0xff]
    %v1683 = vld [vmem:[%s2 + $0x1c8] sm:$0xff]
    %v1684 = vld [vmem:[%s2 + $0x1d0] sm:$0xff]
    %v1685 = vld [vmem:[%s2 + $0x1d8] sm:$0xff]
    %v1686 = vld [vmem:[%s2 + $0x1e0] sm:$0xff]
    %v1687 = vld [vmem:[%s2 + $0x1e8] sm:$0xff]
    %v1688 = vld [vmem:[%s2 + $0x1f0] sm:$0xff]
    %v1689 = vld [vmem:[%s2 + $0x1f8] sm:$0xff]
    %v1690 = vld [vmem:[%s3] sm:$0x1]
    %v1692 = vperm.slane %v1690, 0
    %1694 = vmatpush.msra.mxu0 %v1641
    %1695 = vmatpush.msra.mxu0 %v1640
    %1696 = vmatpush.msra.mxu0 %v1639
    %1697 = vmatpush.msra.mxu0 %v1638
    %1698 = vmatpush.msra.mxu0 %v1637
    %1699 = vmatpush.msra.mxu0 %v1636
    %1700 = vmatpush.msra.mxu0 %v1635
    %1701 = vmatpush.msra.mxu0 %v1634
    %1702 = vmatpush.msra.mxu0 %v1633
    %1703 = vmatpush.msra.mxu0 %v1632
    %1704 = vmatpush.msra.mxu0 %v1631
    %1705 = vmatpush.msra.mxu0 %v1630
    %1706 = vmatpush.msra.mxu0 %v1629
    %1707 = vmatpush.msra.mxu0 %v1628
    %1708 = vmatpush.msra.mxu0 %v1627
    %1709 = vmatpush.msra.mxu0 %v1626
    %1710 = vmatmul.f32.gmra.mxu0 %v1618
    %v1711 = vpop.f32.mrf.mxu0
    %v1712 = vadd.f32 %v1692, %v1711
    %1713 = vmatmul.f32.gmra.mxu0 %v1622
    %v1714 = vpop.f32.mrf.mxu0
    %v1715 = vadd.f32 %v1692, %v1714
    %1716 = vdwg.mxu0
    %1717 = vmatpush.msra.mxu0 %v1657
    %1718 = vmatpush.msra.mxu0 %v1656
    %1719 = vmatpush.msra.mxu0 %v1655
    %1720 = vmatpush.msra.mxu0 %v1654
    %1721 = vmatpush.msra.mxu0 %v1653
    %1722 = vmatpush.msra.mxu0 %v1652
    %1723 = vmatpush.msra.mxu0 %v1651
    %1724 = vmatpush.msra.mxu0 %v1650
    %1725 = vmatpush.msra.mxu0 %v1649
    %1726 = vmatpush.msra.mxu0 %v1648
    %1727 = vmatpush.msra.mxu0 %v1647
    %1728 = vmatpush.msra.mxu0 %v1646
    %1729 = vmatpush.msra.mxu0 %v1645
    %1730 = vmatpush.msra.mxu0 %v1644
    %1731 = vmatpush.msra.mxu0 %v1643
    %1732 = vmatpush.msra.mxu0 %v1642
    %1733 = vmatmul.f32.gmra.mxu0 %v1619
    %v1734 = vpop.f32.mrf.mxu0
    %v1735 = vadd.f32 %v1712, %v1734
    %1736 = vmatmul.f32.gmra.mxu0 %v1623
    %v1737 = vpop.f32.mrf.mxu0
    %v1738 = vadd.f32 %v1715, %v1737
    %1739 = vdwg.mxu0
    %1740 = vmatpush.msra.mxu0 %v1673
    %1741 = vmatpush.msra.mxu0 %v1672
    %1742 = vmatpush.msra.mxu0 %v1671
    %1743 = vmatpush.msra.mxu0 %v1670
    %1744 = vmatpush.msra.mxu0 %v1669
    %1745 = vmatpush.msra.mxu0 %v1668
    %1746 = vmatpush.msra.mxu0 %v1667
    %1747 = vmatpush.msra.mxu0 %v1666
    %1748 = vmatpush.msra.mxu0 %v1665
    %1749 = vmatpush.msra.mxu0 %v1664
    %1750 = vmatpush.msra.mxu0 %v1663
    %1751 = vmatpush.msra.mxu0 %v1662
    %1752 = vmatpush.msra.mxu0 %v1661
    %1753 = vmatpush.msra.mxu0 %v1660
    %1754 = vmatpush.msra.mxu0 %v1659
    %1755 = vmatpush.msra.mxu0 %v1658
    %1756 = vmatmul.f32.gmra.mxu0 %v1620
    %v1757 = vpop.f32.mrf.mxu0
    %v1758 = vadd.f32 %v1735, %v1757
    %1759 = vmatmul.f32.gmra.mxu0 %v1624
    %v1760 = vpop.f32.mrf.mxu0
    %v1761 = vadd.f32 %v1738, %v1760
    %1762 = vdwg.mxu0
    %1763 = vmatpush.msra.mxu0 %v1689
    %1764 = vmatpush.msra.mxu0 %v1688
    %1765 = vmatpush.msra.mxu0 %v1687
    %1766 = vmatpush.msra.mxu0 %v1686
    %1767 = vmatpush.msra.mxu0 %v1685
    %1768 = vmatpush.msra.mxu0 %v1684
    %1769 = vmatpush.msra.mxu0 %v1683
    %1770 = vmatpush.msra.mxu0 %v1682
    %1771 = vmatpush.msra.mxu0 %v1681
    %1772 = vmatpush.msra.mxu0 %v1680
    %1773 = vmatpush.msra.mxu0 %v1679
    %1774 = vmatpush.msra.mxu0 %v1678
    %1775 = vmatpush.msra.mxu0 %v1677
    %1776 = vmatpush.msra.mxu0 %v1676
    %1777 = vmatpush.msra.mxu0 %v1675
    %1778 = vmatpush.msra.mxu0 %v1674
    %1779 = vmatmul.f32.gmra.mxu0 %v1621
    %v1780 = vpop.f32.mrf.mxu0
    %v1781 = vadd.f32 %v1758, %v1780
    %1782 = vmatmul.f32.gmra.mxu0 %v1625
    %v1783 = vpop.f32.mrf.mxu0
    %v1784 = vadd.f32 %v1761, %v1783
    %1785 = vdwg.mxu0
    %1786 = vst.msk [vmem:[#allocation3] sm:$0xff] %vm68, %v1781
    %1787 = vst.msk [vmem:[#allocation3 + $0x8] sm:$0xff] %vm68, %v1784
    // Predicated region
    $region18: #{tpu_custom_call.1} parent=1 // pred_check
      _
    $region19: #{tpu_custom_call.1} parent=1 // pred_check_branch
      %1789 = sbr.rel (0) target = $region21
    $region20: #{tpu_custom_call.1} parent=1 // pred_region
      %1791 = vsyncadd [#allocation4], 0
      %s1792 = sshll.u32 [#allocation3], 4
      %s1793 = int_to_ptr.vmem [resolvable:$true] %s1792
      %s1794 = sshll.u32 %s4, 4
      %s1795 = int_to_ptr.hbm [resolvable:$true] %s1794
      %1800 = dma.vmem_to_hbm [thread:$0]  %s1793, 256, %s1795, [#allocation4], 128, 128, 8
    $region21: #{tpu_custom_call.1} parent=1 // pred_fallthru
      _
    // Predicated region
    $region22: #{tpu_custom_call.1} parent=1 // pred_check
      _
    $region23: #{tpu_custom_call.1} parent=1 // pred_check_branch
      %1802 = sbr.rel (0) target = $region25
    $region24: #{tpu_custom_call.1} parent=1 // pred_region
      %1804 = dma.done [#allocation4], 256
    $region25: #{tpu_custom_call.1} parent=1 // pred_fallthru
      _
    %1805 = vsyncpa [#allocation4], 1

</llo_original>
